<compile_context>
chip_gen: v7x
topology: tpu7x:2x2x1
jax: 0.10.0
libtpu: 0.0.40
codegen_flags: <defaults>
</compile_context>

<pallas_src>
import functools

import jax
import jax.numpy as jnp
from jax import lax
from jax.experimental import pallas as pl
from jax.experimental.pallas import tpu as pltpu

MAX_RPM = 9000.0
MIN_RPM = 1500.0
MAX_RPM_PER_TICK = 20  # unused in forward, kept for parity with the module


def _rnn_kernel(layer_num, seq_len, batch, out_dim, static_unroll, *refs):
    """Single-invocation kernel: whole sequence + all weights live in VMEM.

    refs layout (inputs, output, [scratch]):
      x_ref                 (T*B, D_in)   time-major flattened, RAW rpm
      w0_ih_ref             (D_in, H)     W_ih_0.T with normalization folded in
      whh_fc_ref            (2, H, H)     [0]=W_hh_0.T, [1]=W_fc.T zero-padded
      wcat_ref (if L>1)     (L-1, 2H, H)  [W_ih_l.T ; W_hh_l.T] per deep layer
      bias_ref              (L+1, H)      row0=b0(folded), rows 1..L-1=b_l,
                                          row L = fc_b zero-padded
      out_ref               (B, O)
      xp_ref (scratch, only when not static_unroll)   (T*B, H)
    """
    n_deep = layer_num - 1
    idx = 0
    x_ref = refs[idx]; idx += 1
    w0_ih_ref = refs[idx]; idx += 1
    whh_fc_ref = refs[idx]; idx += 1
    wcat_ref = None
    if n_deep > 0:
        wcat_ref = refs[idx]; idx += 1
    bias_ref = refs[idx]; idx += 1
    out_ref = refs[idx]; idx += 1
    xp_ref = None if static_unroll else refs[idx]

    B = batch
    H = whh_fc_ref.shape[1]

    # Hoist all weight loads and bias broadcasts out of the recurrent loop
    # (broadcast_in_dim is not CSE'd if left inside the loop body).
    w0_hh = whh_fc_ref[0]                                   # (H, H)
    fc_w = whh_fc_ref[1]                                    # (H, H), cols>=O zero
    w_cat = [wcat_ref[l] for l in range(n_deep)]            # each (2H, H)
    b_deep = [jnp.broadcast_to(bias_ref[l + 1:l + 2, :], (B, H))
              for l in range(n_deep)]
    fc_b = bias_ref[layer_num:layer_num + 1, :]             # (1, H), padded

    # Layer-0 input projection for ALL timesteps in a single matmul.  The RPM
    # normalization and the full layer-0 bias are folded into w0_ih / bias row 0
    # by the wrapper, so nothing per-step remains except the recurrent matmul.
    xp_all = (jnp.dot(x_ref[...], w0_ih_ref[...],
                      preferred_element_type=jnp.float32)
              + bias_ref[0:1, :])                           # (T*B, H)

    def one_step(x_t, hs):
        # Layer 0: only the recurrent matmul is on the serial critical path.
        h0 = jnp.maximum(
            x_t + jnp.dot(hs[0], w0_hh, preferred_element_type=jnp.float32),
            0.0)
        new_hs = [h0]
        inp = h0
        # Deeper layers: single fused (B, 2H) @ (2H, H) matmul per layer.
        for l in range(n_deep):
            cat = jnp.concatenate([inp, hs[l + 1]], axis=-1)      # (B, 2H)
            pre = jnp.dot(cat, w_cat[l],
                          preferred_element_type=jnp.float32) + b_deep[l]
            h_new = jnp.maximum(pre, 0.0)                         # relu
            new_hs.append(h_new)
            inp = h_new
        return new_hs

    if static_unroll:
        # Small T: fully static unroll; xp stays in vregs, slices are static.
        hs = [jnp.zeros((B, H), jnp.float32) for _ in range(layer_num)]
        for t in range(seq_len):
            x_t = xp_all[t * B:(t + 1) * B, :]
            hs = one_step(x_t, hs)
        h_last = hs[-1]
    else:
        # Large T: park the projection in a dense 2-D scratch (no per-t padded
        # tiles, no reshape) and run a partially-unrolled fori_loop.
        xp_ref[...] = xp_all

        def step(t, carry):
            row = pl.multiple_of(t * B, B)
            x_t = xp_ref[pl.ds(row, B), :]
            return tuple(one_step(x_t, list(carry)))

        h_init = tuple(jnp.zeros((B, H), jnp.float32)
                       for _ in range(layer_num))
        hs_final = lax.fori_loop(0, seq_len, step, h_init, unroll=8)
        h_last = hs_final[-1]

    # fc(outp[:, -1, :]) == fc(h_T of the last layer); fc_w / fc_b are padded
    # with zeros beyond out_dim, so the slice is exact.
    fc_out = jnp.dot(h_last, fc_w, preferred_element_type=jnp.float32) + fc_b
    out_ref[...] = fc_out[:, :out_dim]


def rnn_forward(x, params, *, hidden_dim, layer_num, output_dim):
    """x: (B, T, D_in) float32 raw RPM values (batch_first, like PyTorch)."""
    B, T, D_in = x.shape
    H = hidden_dim
    x_tm = jnp.transpose(x, (1, 0, 2)).astype(jnp.float32)    # (T, B, D_in)
    x_flat = x_tm.reshape(T * B, D_in)                        # time-major, flat

    inv_range = jnp.float32(1.0 / (MAX_RPM - MIN_RPM))

    # Fold the RPM normalization into the layer-0 weights/bias (exact):
    #   x_norm @ W0.T = x_raw @ (W0.T * inv) - MIN_RPM * inv * colsum(W0.T)
    w0_t = params["w_ih_0"].T.astype(jnp.float32)             # (D_in, H)
    w0_prime = w0_t * inv_range
    b0 = (params["b_ih_0"] + params["b_hh_0"]
          - jnp.float32(MIN_RPM) * inv_range * jnp.sum(w0_t, axis=0)
          ).astype(jnp.float32)

    # Pack W_hh_0 and the (zero-padded) FC weight into one dense slab.
    fc_w_pad = jnp.zeros((H, H), jnp.float32).at[:, :output_dim].set(
        params["fc_w"].T.astype(jnp.float32))
    whh_fc = jnp.stack(
        [params["w_hh_0"].T.astype(jnp.float32), fc_w_pad], axis=0)   # (2,H,H)

    # Bias stack: row 0 = folded layer-0 bias, rows 1..L-1 = deep-layer biases,
    # row L = zero-padded fc bias.
    bias_rows = [b0]
    for l in range(1, layer_num):
        bias_rows.append(
            (params[f"b_ih_{l}"] + params[f"b_hh_{l}"]).astype(jnp.float32))
    fc_b_pad = jnp.zeros((H,), jnp.float32).at[:output_dim].set(
        params["fc_b"].astype(jnp.float32))
    bias_rows.append(fc_b_pad)
    bias_stack = jnp.stack(bias_rows, axis=0)                 # (L+1, H)

    inputs = [x_flat, w0_prime, whh_fc]
    if layer_num > 1:
        wcat = jnp.stack(
            [jnp.concatenate(
                [params[f"w_ih_{l}"].T, params[f"w_hh_{l}"].T],
                axis=0).astype(jnp.float32)
             for l in range(1, layer_num)], axis=0)           # (L-1, 2H, H)
        inputs.append(wcat)
    inputs.append(bias_stack)

    static_unroll = T <= 32
    kernel = functools.partial(
        _rnn_kernel, layer_num, T, B, output_dim, static_unroll)
    vmem_spec = pl.BlockSpec(memory_space=pltpu.MemorySpace.VMEM)
    scratch_shapes = ([] if static_unroll
                      else [pltpu.VMEM((T * B, H), jnp.float32)])

    return pl.pallas_call(
        kernel,
        out_shape=jax.ShapeDtypeStruct((B, output_dim), jnp.float32),
        in_specs=[vmem_spec] * len(inputs),
        out_specs=vmem_spec,
        scratch_shapes=scratch_shapes,
        compiler_params=pltpu.CompilerParams(
            vmem_limit_bytes=32 * 1024 * 1024),
    )(*inputs)


def init_params(key, input_dim, output_dim, hidden_dim, layer_num):
    """Deterministic init mirroring PyTorch's U(-1/sqrt(H), 1/sqrt(H))."""
    params = {}
    k_rnn = 1.0 / float(hidden_dim) ** 0.5
    keys = iter(jax.random.split(key, 4 * layer_num + 2))
    for l in range(layer_num):
        d_l = input_dim if l == 0 else hidden_dim
        params[f"w_ih_{l}"] = jax.random.uniform(
            next(keys), (hidden_dim, d_l), jnp.float32, -k_rnn, k_rnn)
        params[f"w_hh_{l}"] = jax.random.uniform(
            next(keys), (hidden_dim, hidden_dim), jnp.float32, -k_rnn, k_rnn)
        params[f"b_ih_{l}"] = jax.random.uniform(
            next(keys), (hidden_dim,), jnp.float32, -k_rnn, k_rnn)
        params[f"b_hh_{l}"] = jax.random.uniform(
            next(keys), (hidden_dim,), jnp.float32, -k_rnn, k_rnn)
    k_fc = 1.0 / float(hidden_dim) ** 0.5
    params["fc_w"] = jax.random.uniform(
        next(keys), (output_dim, hidden_dim), jnp.float32, -k_fc, k_fc)
    params["fc_b"] = jax.random.uniform(
        next(keys), (output_dim,), jnp.float32, -k_fc, k_fc)
    return params


def rnn_reference(x, params, *, hidden_dim, layer_num, output_dim):
    """Pure-JAX reference of the same forward pass (for a sanity check)."""
    B, T, _ = x.shape
    x = (x.astype(jnp.float32) - MIN_RPM) / (MAX_RPM - MIN_RPM)
    hs = [jnp.zeros((B, hidden_dim), jnp.float32) for _ in range(layer_num)]
    for t in range(T):
        inp = x[:, t, :]
        for l in range(layer_num):
            pre = (inp @ params[f"w_ih_{l}"].T + params[f"b_ih_{l}"]
                   + hs[l] @ params[f"w_hh_{l}"].T + params[f"b_hh_{l}"])
            hs[l] = jnp.maximum(pre, 0.0)
            inp = hs[l]
    return hs[-1] @ params["fc_w"].T + params["fc_b"]


if __name__ == "__main__":
    # Small shapes consistent with the module's forward:
    B, T = 2, 8
    input_dim, output_dim, hidden_dim, layer_num = 4, 2, 32, 2

    key = jax.random.PRNGKey(0)
    k_x, k_p = jax.random.split(key)
    # Raw RPM-like inputs in [MIN_RPM, MAX_RPM].
    x = jax.random.uniform(k_x, (B, T, input_dim), jnp.float32,
                           MIN_RPM, MAX_RPM)
    params = init_params(k_p, input_dim, output_dim, hidden_dim, layer_num)

    out = rnn_forward(x, params, hidden_dim=hidden_dim,
                      layer_num=layer_num, output_dim=output_dim)
    out = jax.block_until_ready(out)

    ref = rnn_reference(x, params, hidden_dim=hidden_dim,
                        layer_num=layer_num, output_dim=output_dim)
    assert out.shape == (B, output_dim)
    assert jnp.allclose(out, ref, rtol=1e-2, atol=1e-2), (out, ref)

    print("KERNEL_OK")
</pallas_src>

<mosaic_0001>
module attributes {stable_mosaic.version = 11 : i64} {
  func.func @_rnn_kernel(%arg0: memref<16x4xf32, #tpu.memory_space<vmem>>, %arg1: memref<4x32xf32, #tpu.memory_space<vmem>>, %arg2: memref<2x32x32xf32, #tpu.memory_space<vmem>>, %arg3: memref<1x64x32xf32, #tpu.memory_space<vmem>>, %arg4: memref<3x32xf32, #tpu.memory_space<vmem>>, %arg5: memref<2x2xf32, #tpu.memory_space<vmem>>) attributes {dimension_semantics = [], scalar_prefetch = 0 : i64, scratch_operands = 0 : i64, tpu.core_type = #tpu.core_type<tc>} {
    %c0 = arith.constant 0 : index
    %c0_0 = arith.constant 0 : index
    %c0_1 = arith.constant 0 : index
    %0 = vector.load %arg2[%c0, %c0_0, %c0_1] : memref<2x32x32xf32, #tpu.memory_space<vmem>>, vector<1x32x32xf32>
    %1 = vector.shape_cast %0 : vector<1x32x32xf32> to vector<32x32xf32>
    %c1 = arith.constant 1 : index
    %c0_2 = arith.constant 0 : index
    %c0_3 = arith.constant 0 : index
    %2 = vector.load %arg2[%c1, %c0_2, %c0_3] : memref<2x32x32xf32, #tpu.memory_space<vmem>>, vector<1x32x32xf32>
    %3 = vector.shape_cast %2 : vector<1x32x32xf32> to vector<32x32xf32>
    %c0_4 = arith.constant 0 : index
    %c0_5 = arith.constant 0 : index
    %c0_6 = arith.constant 0 : index
    %4 = vector.load %arg3[%c0_4, %c0_5, %c0_6] : memref<1x64x32xf32, #tpu.memory_space<vmem>>, vector<1x64x32xf32>
    %5 = vector.shape_cast %4 : vector<1x64x32xf32> to vector<64x32xf32>
    %c1_7 = arith.constant 1 : index
    %c0_8 = arith.constant 0 : index
    %6 = vector.load %arg4[%c1_7, %c0_8] : memref<3x32xf32, #tpu.memory_space<vmem>>, vector<1x32xf32>
    %7 = vector.shape_cast %6 : vector<1x32xf32> to vector<1x32xf32>
    %8 = vector.broadcast %7 : vector<1x32xf32> to vector<2x32xf32>
    %c2 = arith.constant 2 : index
    %c0_9 = arith.constant 0 : index
    %9 = vector.load %arg4[%c2, %c0_9] : memref<3x32xf32, #tpu.memory_space<vmem>>, vector<1x32xf32>
    %c0_10 = arith.constant 0 : index
    %c0_11 = arith.constant 0 : index
    %10 = vector.load %arg0[%c0_10, %c0_11] : memref<16x4xf32, #tpu.memory_space<vmem>>, vector<16x4xf32>
    %c0_12 = arith.constant 0 : index
    %c0_13 = arith.constant 0 : index
    %11 = vector.load %arg1[%c0_12, %c0_13] : memref<4x32xf32, #tpu.memory_space<vmem>>, vector<4x32xf32>
    %cst = arith.constant dense<0.000000e+00> : vector<16x32xf32>
    %12 = tpu.matmul %10, %11, %cst {dimension_numbers = #tpu.dot_dimension_numbers<[1], [0], [0], [1], [0, 0, 1, 1], [], []>} : vector<16x4xf32>, vector<4x32xf32>, vector<16x32xf32> -> vector<16x32xf32>
    %c0_14 = arith.constant 0 : index
    %c0_15 = arith.constant 0 : index
    %13 = vector.load %arg4[%c0_14, %c0_15] : memref<3x32xf32, #tpu.memory_space<vmem>>, vector<1x32xf32>
    %14 = vector.broadcast %13 : vector<1x32xf32> to vector<16x32xf32>
    %15 = arith.addf %12, %14 : vector<16x32xf32>
    %cst_16 = arith.constant 0.000000e+00 : f32
    %16 = vector.broadcast %cst_16 : f32 to vector<2x32xf32>
    %cst_17 = arith.constant 0.000000e+00 : f32
    %17 = vector.broadcast %cst_17 : f32 to vector<2x32xf32>
    %18 = vector.extract_strided_slice %15 {offsets = [0, 0], sizes = [2, 32], strides = [1, 1]} : vector<16x32xf32> to vector<2x32xf32>
    %cst_18 = arith.constant dense<0.000000e+00> : vector<2x32xf32>
    %19 = tpu.matmul %16, %1, %cst_18 {dimension_numbers = #tpu.dot_dimension_numbers<[1], [0], [0], [1], [0, 0, 1, 1], [], []>} : vector<2x32xf32>, vector<32x32xf32>, vector<2x32xf32> -> vector<2x32xf32>
    %20 = arith.addf %18, %19 : vector<2x32xf32>
    %cst_19 = arith.constant 0.000000e+00 : f32
    %21 = vector.broadcast %cst_19 : f32 to vector<2x32xf32>
    %22 = arith.maximumf %20, %21 : vector<2x32xf32>
    %23 = tpu.concatenate %22, %17 in 1 : vector<2x32xf32>, vector<2x32xf32> -> vector<2x64xf32>
    %cst_20 = arith.constant dense<0.000000e+00> : vector<2x32xf32>
    %24 = tpu.matmul %23, %5, %cst_20 {dimension_numbers = #tpu.dot_dimension_numbers<[1], [0], [0], [1], [0, 0, 1, 1], [], []>} : vector<2x64xf32>, vector<64x32xf32>, vector<2x32xf32> -> vector<2x32xf32>
    %25 = arith.addf %24, %8 : vector<2x32xf32>
    %cst_21 = arith.constant 0.000000e+00 : f32
    %26 = vector.broadcast %cst_21 : f32 to vector<2x32xf32>
    %27 = arith.maximumf %25, %26 : vector<2x32xf32>
    %28 = vector.extract_strided_slice %15 {offsets = [2, 0], sizes = [2, 32], strides = [1, 1]} : vector<16x32xf32> to vector<2x32xf32>
    %cst_22 = arith.constant dense<0.000000e+00> : vector<2x32xf32>
    %29 = tpu.matmul %22, %1, %cst_22 {dimension_numbers = #tpu.dot_dimension_numbers<[1], [0], [0], [1], [0, 0, 1, 1], [], []>} : vector<2x32xf32>, vector<32x32xf32>, vector<2x32xf32> -> vector<2x32xf32>
    %30 = arith.addf %28, %29 : vector<2x32xf32>
    %cst_23 = arith.constant 0.000000e+00 : f32
    %31 = vector.broadcast %cst_23 : f32 to vector<2x32xf32>
    %32 = arith.maximumf %30, %31 : vector<2x32xf32>
    %33 = tpu.concatenate %32, %27 in 1 : vector<2x32xf32>, vector<2x32xf32> -> vector<2x64xf32>
    %cst_24 = arith.constant dense<0.000000e+00> : vector<2x32xf32>
    %34 = tpu.matmul %33, %5, %cst_24 {dimension_numbers = #tpu.dot_dimension_numbers<[1], [0], [0], [1], [0, 0, 1, 1], [], []>} : vector<2x64xf32>, vector<64x32xf32>, vector<2x32xf32> -> vector<2x32xf32>
    %35 = arith.addf %34, %8 : vector<2x32xf32>
    %cst_25 = arith.constant 0.000000e+00 : f32
    %36 = vector.broadcast %cst_25 : f32 to vector<2x32xf32>
    %37 = arith.maximumf %35, %36 : vector<2x32xf32>
    %38 = vector.extract_strided_slice %15 {offsets = [4, 0], sizes = [2, 32], strides = [1, 1]} : vector<16x32xf32> to vector<2x32xf32>
    %cst_26 = arith.constant dense<0.000000e+00> : vector<2x32xf32>
    %39 = tpu.matmul %32, %1, %cst_26 {dimension_numbers = #tpu.dot_dimension_numbers<[1], [0], [0], [1], [0, 0, 1, 1], [], []>} : vector<2x32xf32>, vector<32x32xf32>, vector<2x32xf32> -> vector<2x32xf32>
    %40 = arith.addf %38, %39 : vector<2x32xf32>
    %cst_27 = arith.constant 0.000000e+00 : f32
    %41 = vector.broadcast %cst_27 : f32 to vector<2x32xf32>
    %42 = arith.maximumf %40, %41 : vector<2x32xf32>
    %43 = tpu.concatenate %42, %37 in 1 : vector<2x32xf32>, vector<2x32xf32> -> vector<2x64xf32>
    %cst_28 = arith.constant dense<0.000000e+00> : vector<2x32xf32>
    %44 = tpu.matmul %43, %5, %cst_28 {dimension_numbers = #tpu.dot_dimension_numbers<[1], [0], [0], [1], [0, 0, 1, 1], [], []>} : vector<2x64xf32>, vector<64x32xf32>, vector<2x32xf32> -> vector<2x32xf32>
    %45 = arith.addf %44, %8 : vector<2x32xf32>
    %cst_29 = arith.constant 0.000000e+00 : f32
    %46 = vector.broadcast %cst_29 : f32 to vector<2x32xf32>
    %47 = arith.maximumf %45, %46 : vector<2x32xf32>
    %48 = vector.extract_strided_slice %15 {offsets = [6, 0], sizes = [2, 32], strides = [1, 1]} : vector<16x32xf32> to vector<2x32xf32>
    %cst_30 = arith.constant dense<0.000000e+00> : vector<2x32xf32>
    %49 = tpu.matmul %42, %1, %cst_30 {dimension_numbers = #tpu.dot_dimension_numbers<[1], [0], [0], [1], [0, 0, 1, 1], [], []>} : vector<2x32xf32>, vector<32x32xf32>, vector<2x32xf32> -> vector<2x32xf32>
    %50 = arith.addf %48, %49 : vector<2x32xf32>
    %cst_31 = arith.constant 0.000000e+00 : f32
    %51 = vector.broadcast %cst_31 : f32 to vector<2x32xf32>
    %52 = arith.maximumf %50, %51 : vector<2x32xf32>
    %53 = tpu.concatenate %52, %47 in 1 : vector<2x32xf32>, vector<2x32xf32> -> vector<2x64xf32>
    %cst_32 = arith.constant dense<0.000000e+00> : vector<2x32xf32>
    %54 = tpu.matmul %53, %5, %cst_32 {dimension_numbers = #tpu.dot_dimension_numbers<[1], [0], [0], [1], [0, 0, 1, 1], [], []>} : vector<2x64xf32>, vector<64x32xf32>, vector<2x32xf32> -> vector<2x32xf32>
    %55 = arith.addf %54, %8 : vector<2x32xf32>
    %cst_33 = arith.constant 0.000000e+00 : f32
    %56 = vector.broadcast %cst_33 : f32 to vector<2x32xf32>
    %57 = arith.maximumf %55, %56 : vector<2x32xf32>
    %58 = vector.extract_strided_slice %15 {offsets = [8, 0], sizes = [2, 32], strides = [1, 1]} : vector<16x32xf32> to vector<2x32xf32>
    %cst_34 = arith.constant dense<0.000000e+00> : vector<2x32xf32>
    %59 = tpu.matmul %52, %1, %cst_34 {dimension_numbers = #tpu.dot_dimension_numbers<[1], [0], [0], [1], [0, 0, 1, 1], [], []>} : vector<2x32xf32>, vector<32x32xf32>, vector<2x32xf32> -> vector<2x32xf32>
    %60 = arith.addf %58, %59 : vector<2x32xf32>
    %cst_35 = arith.constant 0.000000e+00 : f32
    %61 = vector.broadcast %cst_35 : f32 to vector<2x32xf32>
    %62 = arith.maximumf %60, %61 : vector<2x32xf32>
    %63 = tpu.concatenate %62, %57 in 1 : vector<2x32xf32>, vector<2x32xf32> -> vector<2x64xf32>
    %cst_36 = arith.constant dense<0.000000e+00> : vector<2x32xf32>
    %64 = tpu.matmul %63, %5, %cst_36 {dimension_numbers = #tpu.dot_dimension_numbers<[1], [0], [0], [1], [0, 0, 1, 1], [], []>} : vector<2x64xf32>, vector<64x32xf32>, vector<2x32xf32> -> vector<2x32xf32>
    %65 = arith.addf %64, %8 : vector<2x32xf32>
    %cst_37 = arith.constant 0.000000e+00 : f32
    %66 = vector.broadcast %cst_37 : f32 to vector<2x32xf32>
    %67 = arith.maximumf %65, %66 : vector<2x32xf32>
    %68 = vector.extract_strided_slice %15 {offsets = [10, 0], sizes = [2, 32], strides = [1, 1]} : vector<16x32xf32> to vector<2x32xf32>
    %cst_38 = arith.constant dense<0.000000e+00> : vector<2x32xf32>
    %69 = tpu.matmul %62, %1, %cst_38 {dimension_numbers = #tpu.dot_dimension_numbers<[1], [0], [0], [1], [0, 0, 1, 1], [], []>} : vector<2x32xf32>, vector<32x32xf32>, vector<2x32xf32> -> vector<2x32xf32>
    %70 = arith.addf %68, %69 : vector<2x32xf32>
    %cst_39 = arith.constant 0.000000e+00 : f32
    %71 = vector.broadcast %cst_39 : f32 to vector<2x32xf32>
    %72 = arith.maximumf %70, %71 : vector<2x32xf32>
    %73 = tpu.concatenate %72, %67 in 1 : vector<2x32xf32>, vector<2x32xf32> -> vector<2x64xf32>
    %cst_40 = arith.constant dense<0.000000e+00> : vector<2x32xf32>
    %74 = tpu.matmul %73, %5, %cst_40 {dimension_numbers = #tpu.dot_dimension_numbers<[1], [0], [0], [1], [0, 0, 1, 1], [], []>} : vector<2x64xf32>, vector<64x32xf32>, vector<2x32xf32> -> vector<2x32xf32>
    %75 = arith.addf %74, %8 : vector<2x32xf32>
    %cst_41 = arith.constant 0.000000e+00 : f32
    %76 = vector.broadcast %cst_41 : f32 to vector<2x32xf32>
    %77 = arith.maximumf %75, %76 : vector<2x32xf32>
    %78 = vector.extract_strided_slice %15 {offsets = [12, 0], sizes = [2, 32], strides = [1, 1]} : vector<16x32xf32> to vector<2x32xf32>
    %cst_42 = arith.constant dense<0.000000e+00> : vector<2x32xf32>
    %79 = tpu.matmul %72, %1, %cst_42 {dimension_numbers = #tpu.dot_dimension_numbers<[1], [0], [0], [1], [0, 0, 1, 1], [], []>} : vector<2x32xf32>, vector<32x32xf32>, vector<2x32xf32> -> vector<2x32xf32>
    %80 = arith.addf %78, %79 : vector<2x32xf32>
    %cst_43 = arith.constant 0.000000e+00 : f32
    %81 = vector.broadcast %cst_43 : f32 to vector<2x32xf32>
    %82 = arith.maximumf %80, %81 : vector<2x32xf32>
    %83 = tpu.concatenate %82, %77 in 1 : vector<2x32xf32>, vector<2x32xf32> -> vector<2x64xf32>
    %cst_44 = arith.constant dense<0.000000e+00> : vector<2x32xf32>
    %84 = tpu.matmul %83, %5, %cst_44 {dimension_numbers = #tpu.dot_dimension_numbers<[1], [0], [0], [1], [0, 0, 1, 1], [], []>} : vector<2x64xf32>, vector<64x32xf32>, vector<2x32xf32> -> vector<2x32xf32>
    %85 = arith.addf %84, %8 : vector<2x32xf32>
    %cst_45 = arith.constant 0.000000e+00 : f32
    %86 = vector.broadcast %cst_45 : f32 to vector<2x32xf32>
    %87 = arith.maximumf %85, %86 : vector<2x32xf32>
    %88 = vector.extract_strided_slice %15 {offsets = [14, 0], sizes = [2, 32], strides = [1, 1]} : vector<16x32xf32> to vector<2x32xf32>
    %cst_46 = arith.constant dense<0.000000e+00> : vector<2x32xf32>
    %89 = tpu.matmul %82, %1, %cst_46 {dimension_numbers = #tpu.dot_dimension_numbers<[1], [0], [0], [1], [0, 0, 1, 1], [], []>} : vector<2x32xf32>, vector<32x32xf32>, vector<2x32xf32> -> vector<2x32xf32>
    %90 = arith.addf %88, %89 : vector<2x32xf32>
    %cst_47 = arith.constant 0.000000e+00 : f32
    %91 = vector.broadcast %cst_47 : f32 to vector<2x32xf32>
    %92 = arith.maximumf %90, %91 : vector<2x32xf32>
    %93 = tpu.concatenate %92, %87 in 1 : vector<2x32xf32>, vector<2x32xf32> -> vector<2x64xf32>
    %cst_48 = arith.constant dense<0.000000e+00> : vector<2x32xf32>
    %94 = tpu.matmul %93, %5, %cst_48 {dimension_numbers = #tpu.dot_dimension_numbers<[1], [0], [0], [1], [0, 0, 1, 1], [], []>} : vector<2x64xf32>, vector<64x32xf32>, vector<2x32xf32> -> vector<2x32xf32>
    %95 = arith.addf %94, %8 : vector<2x32xf32>
    %cst_49 = arith.constant 0.000000e+00 : f32
    %96 = vector.broadcast %cst_49 : f32 to vector<2x32xf32>
    %97 = arith.maximumf %95, %96 : vector<2x32xf32>
    %cst_50 = arith.constant dense<0.000000e+00> : vector<2x32xf32>
    %98 = tpu.matmul %97, %3, %cst_50 {dimension_numbers = #tpu.dot_dimension_numbers<[1], [0], [0], [1], [0, 0, 1, 1], [], []>} : vector<2x32xf32>, vector<32x32xf32>, vector<2x32xf32> -> vector<2x32xf32>
    %99 = vector.broadcast %9 : vector<1x32xf32> to vector<2x32xf32>
    %100 = arith.addf %98, %99 : vector<2x32xf32>
    %101 = vector.extract_strided_slice %100 {offsets = [0, 0], sizes = [2, 2], strides = [1, 1]} : vector<2x32xf32> to vector<2x2xf32>
    %c0_51 = arith.constant 0 : index
    %c0_52 = arith.constant 0 : index
    %102 = vector.load %arg5[%c0_51, %c0_52] : memref<2x2xf32, #tpu.memory_space<vmem>>, vector<2x2xf32>
    tpu.vector_store %arg5[%c0_51, %c0_52], %101 {strides = array<i32>} : memref<2x2xf32, #tpu.memory_space<vmem>>, vector<2x2xf32>,
    return
  }
}

</mosaic_0001>

<llo_original>
// kernel: tpu_custom_call.1
$region0: #{tpu_custom_call.1}
  #allocation0 [shape = 'u32[]', space=smem, size = 0x4, offset = 0x4, fixed_abs, tag = 'smem constant byte address 0x4 - core index']
  #allocation1 [shape = 'u32[144,128]{1,0:T(1,128)}', space=vmem, size = 0x12000, scoped, tag = 'internal scratch']
  %s0 = inlined_call_operand.vmem [shape: f32[16,4], index: 0, kind: input, shape index: {}]
  %s1 = inlined_call_operand.vmem [shape: f32[4,32], index: 1, kind: input, shape index: {}]
  %s2 = inlined_call_operand.vmem [shape: f32[2,32,32], index: 2, kind: input, shape index: {}]
  %s3 = inlined_call_operand.vmem [shape: f32[1,64,32], index: 3, kind: input, shape index: {}]
  %s4 = inlined_call_operand.vmem [shape: f32[3,32], index: 4, kind: input, shape index: {}]
  %s5 = inlined_call_operand.hbm [shape: f32[2,2], index: 5, kind: output, shape index: {}]
  %s6 = sld [smem:[#allocation0]]
  $region30: #{tpu_custom_call.1} parent=0
    _
  %s8 = ssub.s32 1, %s6
  %s9 = scalar_select 0, %s8, %s6
  $region1: #{tpu_custom_call.1} parent=0
    #allocation2 [shape = 'u8[1024]{0}', space=vmem, size = 0x400, scoped, tag = 'output window, operand 0, single buffered']
    #allocation3 [shape = 's32[1]{0}', space=sflag, size = 0x4, scoped, tag = 'scoped memory for tpu_custom_call.1']
    %10 = vsyncpa [#allocation3], 0
    // Predicated region
    $region2: #{tpu_custom_call.1} parent=1 // pred_check
      _
    $region3: #{tpu_custom_call.1} parent=1 // pred_check_branch
      %12 = sbr.rel (0) target = $region5
    $region4: #{tpu_custom_call.1} parent=1 // pred_region
      _
    $region5: #{tpu_custom_call.1} parent=1 // pred_fallthru
      _
    // Predicated region
    $region6: #{tpu_custom_call.1} parent=1 // pred_check
      _
    $region7: #{tpu_custom_call.1} parent=1 // pred_check_branch
      %14 = sbr.rel (0) target = $region9
    $region8: #{tpu_custom_call.1} parent=1 // pred_region
      _
    $region9: #{tpu_custom_call.1} parent=1 // pred_fallthru
      _
    // Predicated region
    $region10: #{tpu_custom_call.1} parent=1 // pred_check
      _
    $region11: #{tpu_custom_call.1} parent=1 // pred_check_branch
      %16 = sbr.rel (0) target = $region13
    $region12: #{tpu_custom_call.1} parent=1 // pred_region
      _
    $region13: #{tpu_custom_call.1} parent=1 // pred_fallthru
      _
    // Predicated region
    $region14: #{tpu_custom_call.1} parent=1 // pred_check
      _
    $region15: #{tpu_custom_call.1} parent=1 // pred_check_branch
      %18 = sbr.rel (0) target = $region17
    $region16: #{tpu_custom_call.1} parent=1 // pred_region
      _
    $region17: #{tpu_custom_call.1} parent=1 // pred_fallthru
      _
    // Predicated region
    $region18: #{tpu_custom_call.1} parent=1 // pred_check
      _
    $region19: #{tpu_custom_call.1} parent=1 // pred_check_branch
      %20 = sbr.rel (0) target = $region21
    $region20: #{tpu_custom_call.1} parent=1 // pred_region
      _
    $region21: #{tpu_custom_call.1} parent=1 // pred_fallthru
      _
    %v21 = vld [vmem:[%s2] sm:$0xff]
    %v22 = vld [vmem:[%s2 + $0x8] sm:$0xff]
    %v23 = vld [vmem:[%s2 + $0x10] sm:$0xff]
    %v24 = vld [vmem:[%s2 + $0x18] sm:$0xff]
    %s25 = scalar_lea.vmem %s2, 32
    %v26 = vld [vmem:[%s25] sm:$0xff]
    %v27 = vld [vmem:[%s25 + $0x8] sm:$0xff]
    %v28 = vld [vmem:[%s25 + $0x10] sm:$0xff]
    %v29 = vld [vmem:[%s25 + $0x18] sm:$0xff]
    %v30 = vld [vmem:[%s3] sm:$0xff]
    %v31 = vld [vmem:[%s3 + $0x8] sm:$0xff]
    %v32 = vld [vmem:[%s3 + $0x10] sm:$0xff]
    %v33 = vld [vmem:[%s3 + $0x18] sm:$0xff]
    %v34 = vld [vmem:[%s3 + $0x20] sm:$0xff]
    %v35 = vld [vmem:[%s3 + $0x28] sm:$0xff]
    %v36 = vld [vmem:[%s3 + $0x30] sm:$0xff]
    %v37 = vld [vmem:[%s3 + $0x38] sm:$0xff]
    %v38 = vld [vmem:[%s4 + $0x1] sm:$0x1]
    %v39 = vlaneseq
    %v40 = vshrl.u32 %v39, 7
    %v41 = vsub.s32 0, %v40
    %v42 = vrot.slane %v38, %v41
    %v43 = vld [vmem:[%s4 + $0x2] sm:$0x1]
    %v44 = vld [vmem:[%s0] sm:$0xff]
    %v45 = vld [vmem:[%s0 + $0x8] sm:$0xff]
    %v46 = vld [vmem:[%s1] sm:$0xf]
    %v47 = vld [vmem:[%s4] sm:$0x1]
    %v48 = vlaneseq
    %v49 = vshrl.u32 %v48, 7
    %v50 = vsub.s32 0, %v49
    %v51 = vrot.slane %v47, %v50
    %vm52 = vcmask 31744
    %v54 = vsel %vm52, %v44, 0
    %v57 = vsel %vm52, %v45, 0
    %vm59 = vcmask 1043456
    %v61 = vsel %vm59, %v46, 0
    %63 = vmatprep.subr.mxu0 0.0
    %64 = vmatpush1.msra.mxu0 %v61
    %65 = vmatprep.subr.mxu0 0.0
    %66 = vmatpush1.msra.mxu0 0.0
    %67 = vmatprep.subr.mxu0 0.0
    %68 = vmatpush1.msra.mxu0 0.0
    %69 = vmatprep.subr.mxu0 0.0
    %70 = vmatpush1.msra.mxu0 0.0
    %71 = vmatprep.subr.mxu0 0.0
    %72 = vmatpush1.msra.mxu0 0.0
    %73 = vmatprep.subr.mxu0 0.0
    %74 = vmatpush1.msra.mxu0 0.0
    %75 = vmatprep.subr.mxu0 0.0
    %76 = vmatpush1.msra.mxu0 0.0
    %77 = vmatprep.subr.mxu0 0.0
    %78 = vmatpush1.msra.mxu0 0.0
    %79 = vmatprep.subr.mxu0 0.0
    %80 = vmatpush1.msra.mxu0 0.0
    %81 = vmatprep.subr.mxu0 0.0
    %82 = vmatpush1.msra.mxu0 0.0
    %83 = vmatprep.subr.mxu0 0.0
    %84 = vmatpush1.msra.mxu0 0.0
    %85 = vmatprep.subr.mxu0 0.0
    %86 = vmatpush1.msra.mxu0 0.0
    %87 = vmatprep.subr.mxu0 0.0
    %88 = vmatpush1.msra.mxu0 0.0
    %89 = vmatprep.subr.mxu0 0.0
    %90 = vmatpush1.msra.mxu0 0.0
    %91 = vmatprep.subr.mxu0 0.0
    %92 = vmatpush1.msra.mxu0 0.0
    %93 = vmatprep.subr.mxu0 0.0
    %94 = vmatpush1.msra.mxu0 0.0
    %95 = vmatprep.subr.mxu0 0.0
    %96 = vmatpush1.msra.mxu0 0.0
    %97 = vmatprep.subr.mxu0 0.0
    %98 = vmatpush1.msra.mxu0 0.0
    %99 = vmatprep.subr.mxu0 0.0
    %100 = vmatpush1.msra.mxu0 0.0
    %101 = vmatprep.subr.mxu0 0.0
    %102 = vmatpush1.msra.mxu0 0.0
    %103 = vmatprep.subr.mxu0 0.0
    %104 = vmatpush1.msra.mxu0 0.0
    %105 = vmatprep.subr.mxu0 0.0
    %106 = vmatpush1.msra.mxu0 0.0
    %107 = vmatprep.subr.mxu0 0.0
    %108 = vmatpush1.msra.mxu0 0.0
    %109 = vmatprep.subr.mxu0 0.0
    %110 = vmatpush1.msra.mxu0 0.0
    %111 = vmatprep.subr.mxu0 0.0
    %112 = vmatpush1.msra.mxu0 0.0
    %113 = vmatprep.subr.mxu0 0.0
    %114 = vmatpush1.msra.mxu0 0.0
    %115 = vmatprep.subr.mxu0 0.0
    %116 = vmatpush1.msra.mxu0 0.0
    %117 = vmatprep.subr.mxu0 0.0
    %118 = vmatpush1.msra.mxu0 0.0
    %119 = vmatprep.subr.mxu0 0.0
    %120 = vmatpush1.msra.mxu0 0.0
    %121 = vmatprep.subr.mxu0 0.0
    %122 = vmatpush1.msra.mxu0 0.0
    %123 = vmatprep.subr.mxu0 0.0
    %124 = vmatpush1.msra.mxu0 0.0
    %125 = vmatprep.subr.mxu0 0.0
    %126 = vmatpush1.msra.mxu0 0.0
    %127 = vmatprep.mubr.f32.mxu0 0.0
    %128 = vmatmul.mubr.f32.gmra.mrb[0].mxu0 %v54
    %v129 = vpop.f32.mrb[0].mxu0
    %v130 = vadd.f32 %v51, %v129
    %v131 = vpop.f32.mrb[0].mxu0
    %132 = vmatprep.mubr.f32.mxu0 0.0
    %133 = vmatmul.mubr.f32.gmra.mrb[0].mxu0 %v57
    %v134 = vpop.f32.mrb[0].mxu0
    %v135 = vadd.f32 %v51, %v134
    %v136 = vpop.f32.mrb[0].mxu0
    %137 = vdwg.mxu0
    %vm138 = vcmask 261120
    %v140 = vsel %vm138, 0.0, 0
    %142 = vmatprep.subr.mxu0 0.0
    %143 = vmatpush1.msra.mxu0 %v21
    %144 = vmatprep.subr.mxu0 0.0
    %145 = vmatpush1.msra.mxu0 %v22
    %146 = vmatprep.subr.mxu0 0.0
    %147 = vmatpush1.msra.mxu0 %v23
    %148 = vmatprep.subr.mxu0 0.0
    %149 = vmatpush1.msra.mxu0 %v24
    %150 = vmatprep.subr.mxu0 0.0
    %151 = vmatpush1.msra.mxu0 0.0
    %152 = vmatprep.subr.mxu0 0.0
    %153 = vmatpush1.msra.mxu0 0.0
    %154 = vmatprep.subr.mxu0 0.0
    %155 = vmatpush1.msra.mxu0 0.0
    %156 = vmatprep.subr.mxu0 0.0
    %157 = vmatpush1.msra.mxu0 0.0
    %158 = vmatprep.subr.mxu0 0.0
    %159 = vmatpush1.msra.mxu0 0.0
    %160 = vmatprep.subr.mxu0 0.0
    %161 = vmatpush1.msra.mxu0 0.0
    %162 = vmatprep.subr.mxu0 0.0
    %163 = vmatpush1.msra.mxu0 0.0
    %164 = vmatprep.subr.mxu0 0.0
    %165 = vmatpush1.msra.mxu0 0.0
    %166 = vmatprep.subr.mxu0 0.0
    %167 = vmatpush1.msra.mxu0 0.0
    %168 = vmatprep.subr.mxu0 0.0
    %169 = vmatpush1.msra.mxu0 0.0
    %170 = vmatprep.subr.mxu0 0.0
    %171 = vmatpush1.msra.mxu0 0.0
    %172 = vmatprep.subr.mxu0 0.0
    %173 = vmatpush1.msra.mxu0 0.0
    %174 = vmatprep.subr.mxu0 0.0
    %175 = vmatpush1.msra.mxu0 0.0
    %176 = vmatprep.subr.mxu0 0.0
    %177 = vmatpush1.msra.mxu0 0.0
    %178 = vmatprep.subr.mxu0 0.0
    %179 = vmatpush1.msra.mxu0 0.0
    %180 = vmatprep.subr.mxu0 0.0
    %181 = vmatpush1.msra.mxu0 0.0
    %182 = vmatprep.subr.mxu0 0.0
    %183 = vmatpush1.msra.mxu0 0.0
    %184 = vmatprep.subr.mxu0 0.0
    %185 = vmatpush1.msra.mxu0 0.0
    %186 = vmatprep.subr.mxu0 0.0
    %187 = vmatpush1.msra.mxu0 0.0
    %188 = vmatprep.subr.mxu0 0.0
    %189 = vmatpush1.msra.mxu0 0.0
    %190 = vmatprep.subr.mxu0 0.0
    %191 = vmatpush1.msra.mxu0 0.0
    %192 = vmatprep.subr.mxu0 0.0
    %193 = vmatpush1.msra.mxu0 0.0
    %194 = vmatprep.subr.mxu0 0.0
    %195 = vmatpush1.msra.mxu0 0.0
    %196 = vmatprep.subr.mxu0 0.0
    %197 = vmatpush1.msra.mxu0 0.0
    %198 = vmatprep.subr.mxu0 0.0
    %199 = vmatpush1.msra.mxu0 0.0
    %200 = vmatprep.subr.mxu0 0.0
    %201 = vmatpush1.msra.mxu0 0.0
    %202 = vmatprep.subr.mxu0 0.0
    %203 = vmatpush1.msra.mxu0 0.0
    %204 = vmatprep.subr.mxu0 0.0
    %205 = vmatpush1.msra.mxu0 0.0
    %206 = vmatprep.mubr.f32.mxu0 0.0
    %207 = vmatmul.mubr.f32.gmra.mrb[0].mxu0 %v140
    %v208 = vpop.f32.mrb[0].mxu0
    %v209 = vadd.f32 0.0, %v208
    %v210 = vpop.f32.mrb[0].mxu0
    %211 = vdwg.mxu0
    %v212 = vadd.f32 %v130, %v209
    %v213 = vmax.f32 %v212, 0.0
    %v214 = vsel %vm138, %v213, 0.0
    %vm215 = vcmask 523264
    %v217 = vsel %vm215, %v214, 0
    %219 = vmatprep.subr.mxu0 0.0
    %220 = vmatpush1.msra.mxu0 %v30
    %221 = vmatprep.subr.mxu0 0.0
    %222 = vmatpush1.msra.mxu0 %v31
    %223 = vmatprep.subr.mxu0 0.0
    %224 = vmatpush1.msra.mxu0 %v32
    %225 = vmatprep.subr.mxu0 0.0
    %226 = vmatpush1.msra.mxu0 %v33
    %227 = vmatprep.subr.mxu0 0.0
    %228 = vmatpush1.msra.mxu0 %v34
    %229 = vmatprep.subr.mxu0 0.0
    %230 = vmatpush1.msra.mxu0 %v35
    %231 = vmatprep.subr.mxu0 0.0
    %232 = vmatpush1.msra.mxu0 %v36
    %233 = vmatprep.subr.mxu0 0.0
    %234 = vmatpush1.msra.mxu0 %v37
    %235 = vmatprep.subr.mxu0 0.0
    %236 = vmatpush1.msra.mxu0 0.0
    %237 = vmatprep.subr.mxu0 0.0
    %238 = vmatpush1.msra.mxu0 0.0
    %239 = vmatprep.subr.mxu0 0.0
    %240 = vmatpush1.msra.mxu0 0.0
    %241 = vmatprep.subr.mxu0 0.0
    %242 = vmatpush1.msra.mxu0 0.0
    %243 = vmatprep.subr.mxu0 0.0
    %244 = vmatpush1.msra.mxu0 0.0
    %245 = vmatprep.subr.mxu0 0.0
    %246 = vmatpush1.msra.mxu0 0.0
    %247 = vmatprep.subr.mxu0 0.0
    %248 = vmatpush1.msra.mxu0 0.0
    %249 = vmatprep.subr.mxu0 0.0
    %250 = vmatpush1.msra.mxu0 0.0
    %251 = vmatprep.subr.mxu0 0.0
    %252 = vmatpush1.msra.mxu0 0.0
    %253 = vmatprep.subr.mxu0 0.0
    %254 = vmatpush1.msra.mxu0 0.0
    %255 = vmatprep.subr.mxu0 0.0
    %256 = vmatpush1.msra.mxu0 0.0
    %257 = vmatprep.subr.mxu0 0.0
    %258 = vmatpush1.msra.mxu0 0.0
    %259 = vmatprep.subr.mxu0 0.0
    %260 = vmatpush1.msra.mxu0 0.0
    %261 = vmatprep.subr.mxu0 0.0
    %262 = vmatpush1.msra.mxu0 0.0
    %263 = vmatprep.subr.mxu0 0.0
    %264 = vmatpush1.msra.mxu0 0.0
    %265 = vmatprep.subr.mxu0 0.0
    %266 = vmatpush1.msra.mxu0 0.0
    %267 = vmatprep.subr.mxu0 0.0
    %268 = vmatpush1.msra.mxu0 0.0
    %269 = vmatprep.subr.mxu0 0.0
    %270 = vmatpush1.msra.mxu0 0.0
    %271 = vmatprep.subr.mxu0 0.0
    %272 = vmatpush1.msra.mxu0 0.0
    %273 = vmatprep.subr.mxu0 0.0
    %274 = vmatpush1.msra.mxu0 0.0
    %275 = vmatprep.subr.mxu0 0.0
    %276 = vmatpush1.msra.mxu0 0.0
    %277 = vmatprep.subr.mxu0 0.0
    %278 = vmatpush1.msra.mxu0 0.0
    %279 = vmatprep.subr.mxu0 0.0
    %280 = vmatpush1.msra.mxu0 0.0
    %281 = vmatprep.subr.mxu0 0.0
    %282 = vmatpush1.msra.mxu0 0.0
    %283 = vmatprep.mubr.f32.mxu0 0.0
    %284 = vmatmul.mubr.f32.gmra.mrb[0].mxu0 %v217
    %v285 = vpop.f32.mrb[0].mxu0
    %v286 = vadd.f32 %v42, %v285
    %v287 = vpop.f32.mrb[0].mxu0
    %288 = vdwg.mxu0
    %v289 = vmax.f32 %v286, 0.0
    %v291 = vsel %vm138, %v213, 0
    %293 = vmatprep.subr.mxu0 0.0
    %294 = vmatpush1.msra.mxu0 %v21
    %295 = vmatprep.subr.mxu0 0.0
    %296 = vmatpush1.msra.mxu0 %v22
    %297 = vmatprep.subr.mxu0 0.0
    %298 = vmatpush1.msra.mxu0 %v23
    %299 = vmatprep.subr.mxu0 0.0
    %300 = vmatpush1.msra.mxu0 %v24
    %301 = vmatprep.subr.mxu0 0.0
    %302 = vmatpush1.msra.mxu0 0.0
    %303 = vmatprep.subr.mxu0 0.0
    %304 = vmatpush1.msra.mxu0 0.0
    %305 = vmatprep.subr.mxu0 0.0
    %306 = vmatpush1.msra.mxu0 0.0
    %307 = vmatprep.subr.mxu0 0.0
    %308 = vmatpush1.msra.mxu0 0.0
    %309 = vmatprep.subr.mxu0 0.0
    %310 = vmatpush1.msra.mxu0 0.0
    %311 = vmatprep.subr.mxu0 0.0
    %312 = vmatpush1.msra.mxu0 0.0
    %313 = vmatprep.subr.mxu0 0.0
    %314 = vmatpush1.msra.mxu0 0.0
    %315 = vmatprep.subr.mxu0 0.0
    %316 = vmatpush1.msra.mxu0 0.0
    %317 = vmatprep.subr.mxu0 0.0
    %318 = vmatpush1.msra.mxu0 0.0
    %319 = vmatprep.subr.mxu0 0.0
    %320 = vmatpush1.msra.mxu0 0.0
    %321 = vmatprep.subr.mxu0 0.0
    %322 = vmatpush1.msra.mxu0 0.0
    %323 = vmatprep.subr.mxu0 0.0
    %324 = vmatpush1.msra.mxu0 0.0
    %325 = vmatprep.subr.mxu0 0.0
    %326 = vmatpush1.msra.mxu0 0.0
    %327 = vmatprep.subr.mxu0 0.0
    %328 = vmatpush1.msra.mxu0 0.0
    %329 = vmatprep.subr.mxu0 0.0
    %330 = vmatpush1.msra.mxu0 0.0
    %331 = vmatprep.subr.mxu0 0.0
    %332 = vmatpush1.msra.mxu0 0.0
    %333 = vmatprep.subr.mxu0 0.0
    %334 = vmatpush1.msra.mxu0 0.0
    %335 = vmatprep.subr.mxu0 0.0
    %336 = vmatpush1.msra.mxu0 0.0
    %337 = vmatprep.subr.mxu0 0.0
    %338 = vmatpush1.msra.mxu0 0.0
    %339 = vmatprep.subr.mxu0 0.0
    %340 = vmatpush1.msra.mxu0 0.0
    %341 = vmatprep.subr.mxu0 0.0
    %342 = vmatpush1.msra.mxu0 0.0
    %343 = vmatprep.subr.mxu0 0.0
    %344 = vmatpush1.msra.mxu0 0.0
    %345 = vmatprep.subr.mxu0 0.0
    %346 = vmatpush1.msra.mxu0 0.0
    %347 = vmatprep.subr.mxu0 0.0
    %348 = vmatpush1.msra.mxu0 0.0
    %349 = vmatprep.subr.mxu0 0.0
    %350 = vmatpush1.msra.mxu0 0.0
    %351 = vmatprep.subr.mxu0 0.0
    %352 = vmatpush1.msra.mxu0 0.0
    %353 = vmatprep.subr.mxu0 0.0
    %354 = vmatpush1.msra.mxu0 0.0
    %355 = vmatprep.subr.mxu0 0.0
    %356 = vmatpush1.msra.mxu0 0.0
    %357 = vmatprep.mubr.f32.mxu0 0.0
    %358 = vmatmul.mubr.f32.gmra.mrb[0].mxu0 %v291
    %v359 = vpop.f32.mrb[0].mxu0
    %v360 = vadd.f32 0.0, %v359
    %v361 = vpop.f32.mrb[0].mxu0
    %362 = vdwg.mxu0
    %v364 = vrot.slane %v360, 6
    %v366 = vadd.f32 %v130, %v364
    %v367 = vmax.f32 %v366, 0.0
    %v369 = vrot.slane %v289, 6
    %370 = vrot.lane.b32.xlu0 %v369, 32
    %v371 = vpop.permute.xlu0 %370
    %v373 = vsel %vm138, %v367, %v371
    %v375 = vrot.slane %v373, 2
    %v376 = vsel %vm215, %v375, 0
    %378 = vmatprep.subr.mxu0 0.0
    %379 = vmatpush1.msra.mxu0 %v30
    %380 = vmatprep.subr.mxu0 0.0
    %381 = vmatpush1.msra.mxu0 %v31
    %382 = vmatprep.subr.mxu0 0.0
    %383 = vmatpush1.msra.mxu0 %v32
    %384 = vmatprep.subr.mxu0 0.0
    %385 = vmatpush1.msra.mxu0 %v33
    %386 = vmatprep.subr.mxu0 0.0
    %387 = vmatpush1.msra.mxu0 %v34
    %388 = vmatprep.subr.mxu0 0.0
    %389 = vmatpush1.msra.mxu0 %v35
    %390 = vmatprep.subr.mxu0 0.0
    %391 = vmatpush1.msra.mxu0 %v36
    %392 = vmatprep.subr.mxu0 0.0
    %393 = vmatpush1.msra.mxu0 %v37
    %394 = vmatprep.subr.mxu0 0.0
    %395 = vmatpush1.msra.mxu0 0.0
    %396 = vmatprep.subr.mxu0 0.0
    %397 = vmatpush1.msra.mxu0 0.0
    %398 = vmatprep.subr.mxu0 0.0
    %399 = vmatpush1.msra.mxu0 0.0
    %400 = vmatprep.subr.mxu0 0.0
    %401 = vmatpush1.msra.mxu0 0.0
    %402 = vmatprep.subr.mxu0 0.0
    %403 = vmatpush1.msra.mxu0 0.0
    %404 = vmatprep.subr.mxu0 0.0
    %405 = vmatpush1.msra.mxu0 0.0
    %406 = vmatprep.subr.mxu0 0.0
    %407 = vmatpush1.msra.mxu0 0.0
    %408 = vmatprep.subr.mxu0 0.0
    %409 = vmatpush1.msra.mxu0 0.0
    %410 = vmatprep.subr.mxu0 0.0
    %411 = vmatpush1.msra.mxu0 0.0
    %412 = vmatprep.subr.mxu0 0.0
    %413 = vmatpush1.msra.mxu0 0.0
    %414 = vmatprep.subr.mxu0 0.0
    %415 = vmatpush1.msra.mxu0 0.0
    %416 = vmatprep.subr.mxu0 0.0
    %417 = vmatpush1.msra.mxu0 0.0
    %418 = vmatprep.subr.mxu0 0.0
    %419 = vmatpush1.msra.mxu0 0.0
    %420 = vmatprep.subr.mxu0 0.0
    %421 = vmatpush1.msra.mxu0 0.0
    %422 = vmatprep.subr.mxu0 0.0
    %423 = vmatpush1.msra.mxu0 0.0
    %424 = vmatprep.subr.mxu0 0.0
    %425 = vmatpush1.msra.mxu0 0.0
    %426 = vmatprep.subr.mxu0 0.0
    %427 = vmatpush1.msra.mxu0 0.0
    %428 = vmatprep.subr.mxu0 0.0
    %429 = vmatpush1.msra.mxu0 0.0
    %430 = vmatprep.subr.mxu0 0.0
    %431 = vmatpush1.msra.mxu0 0.0
    %432 = vmatprep.subr.mxu0 0.0
    %433 = vmatpush1.msra.mxu0 0.0
    %434 = vmatprep.subr.mxu0 0.0
    %435 = vmatpush1.msra.mxu0 0.0
    %436 = vmatprep.subr.mxu0 0.0
    %437 = vmatpush1.msra.mxu0 0.0
    %438 = vmatprep.subr.mxu0 0.0
    %439 = vmatpush1.msra.mxu0 0.0
    %440 = vmatprep.subr.mxu0 0.0
    %441 = vmatpush1.msra.mxu0 0.0
    %442 = vmatprep.mubr.f32.mxu0 0.0
    %443 = vmatmul.mubr.f32.gmra.mrb[0].mxu0 %v376
    %v444 = vpop.f32.mrb[0].mxu0
    %v445 = vadd.f32 %v42, %v444
    %v446 = vpop.f32.mrb[0].mxu0
    %447 = vdwg.mxu0
    %v448 = vmax.f32 %v445, 0.0
    %v450 = vrot.slane %v367, 2
    %v451 = vsel %vm138, %v450, 0
    %453 = vmatprep.subr.mxu0 0.0
    %454 = vmatpush1.msra.mxu0 %v21
    %455 = vmatprep.subr.mxu0 0.0
    %456 = vmatpush1.msra.mxu0 %v22
    %457 = vmatprep.subr.mxu0 0.0
    %458 = vmatpush1.msra.mxu0 %v23
    %459 = vmatprep.subr.mxu0 0.0
    %460 = vmatpush1.msra.mxu0 %v24
    %461 = vmatprep.subr.mxu0 0.0
    %462 = vmatpush1.msra.mxu0 0.0
    %463 = vmatprep.subr.mxu0 0.0
    %464 = vmatpush1.msra.mxu0 0.0
    %465 = vmatprep.subr.mxu0 0.0
    %466 = vmatpush1.msra.mxu0 0.0
    %467 = vmatprep.subr.mxu0 0.0
    %468 = vmatpush1.msra.mxu0 0.0
    %469 = vmatprep.subr.mxu0 0.0
    %470 = vmatpush1.msra.mxu0 0.0
    %471 = vmatprep.subr.mxu0 0.0
    %472 = vmatpush1.msra.mxu0 0.0
    %473 = vmatprep.subr.mxu0 0.0
    %474 = vmatpush1.msra.mxu0 0.0
    %475 = vmatprep.subr.mxu0 0.0
    %476 = vmatpush1.msra.mxu0 0.0
    %477 = vmatprep.subr.mxu0 0.0
    %478 = vmatpush1.msra.mxu0 0.0
    %479 = vmatprep.subr.mxu0 0.0
    %480 = vmatpush1.msra.mxu0 0.0
    %481 = vmatprep.subr.mxu0 0.0
    %482 = vmatpush1.msra.mxu0 0.0
    %483 = vmatprep.subr.mxu0 0.0
    %484 = vmatpush1.msra.mxu0 0.0
    %485 = vmatprep.subr.mxu0 0.0
    %486 = vmatpush1.msra.mxu0 0.0
    %487 = vmatprep.subr.mxu0 0.0
    %488 = vmatpush1.msra.mxu0 0.0
    %489 = vmatprep.subr.mxu0 0.0
    %490 = vmatpush1.msra.mxu0 0.0
    %491 = vmatprep.subr.mxu0 0.0
    %492 = vmatpush1.msra.mxu0 0.0
    %493 = vmatprep.subr.mxu0 0.0
    %494 = vmatpush1.msra.mxu0 0.0
    %495 = vmatprep.subr.mxu0 0.0
    %496 = vmatpush1.msra.mxu0 0.0
    %497 = vmatprep.subr.mxu0 0.0
    %498 = vmatpush1.msra.mxu0 0.0
    %499 = vmatprep.subr.mxu0 0.0
    %500 = vmatpush1.msra.mxu0 0.0
    %501 = vmatprep.subr.mxu0 0.0
    %502 = vmatpush1.msra.mxu0 0.0
    %503 = vmatprep.subr.mxu0 0.0
    %504 = vmatpush1.msra.mxu0 0.0
    %505 = vmatprep.subr.mxu0 0.0
    %506 = vmatpush1.msra.mxu0 0.0
    %507 = vmatprep.subr.mxu0 0.0
    %508 = vmatpush1.msra.mxu0 0.0
    %509 = vmatprep.subr.mxu0 0.0
    %510 = vmatpush1.msra.mxu0 0.0
    %511 = vmatprep.subr.mxu0 0.0
    %512 = vmatpush1.msra.mxu0 0.0
    %513 = vmatprep.subr.mxu0 0.0
    %514 = vmatpush1.msra.mxu0 0.0
    %515 = vmatprep.subr.mxu0 0.0
    %516 = vmatpush1.msra.mxu0 0.0
    %517 = vmatprep.mubr.f32.mxu0 0.0
    %518 = vmatmul.mubr.f32.gmra.mrb[0].mxu0 %v451
    %v519 = vpop.f32.mrb[0].mxu0
    %v520 = vadd.f32 0.0, %v519
    %v521 = vpop.f32.mrb[0].mxu0
    %522 = vdwg.mxu0
    %v524 = vrot.slane %v520, 4
    %v526 = vadd.f32 %v130, %v524
    %v527 = vmax.f32 %v526, 0.0
    %v529 = vrot.slane %v448, 4
    %530 = vrot.lane.b32.xlu0 %v529, 32
    %v531 = vpop.permute.xlu0 %530
    %v533 = vsel %vm138, %v527, %v531
    %v535 = vrot.slane %v533, 4
    %v536 = vsel %vm215, %v535, 0
    %538 = vmatprep.subr.mxu0 0.0
    %539 = vmatpush1.msra.mxu0 %v30
    %540 = vmatprep.subr.mxu0 0.0
    %541 = vmatpush1.msra.mxu0 %v31
    %542 = vmatprep.subr.mxu0 0.0
    %543 = vmatpush1.msra.mxu0 %v32
    %544 = vmatprep.subr.mxu0 0.0
    %545 = vmatpush1.msra.mxu0 %v33
    %546 = vmatprep.subr.mxu0 0.0
    %547 = vmatpush1.msra.mxu0 %v34
    %548 = vmatprep.subr.mxu0 0.0
    %549 = vmatpush1.msra.mxu0 %v35
    %550 = vmatprep.subr.mxu0 0.0
    %551 = vmatpush1.msra.mxu0 %v36
    %552 = vmatprep.subr.mxu0 0.0
    %553 = vmatpush1.msra.mxu0 %v37
    %554 = vmatprep.subr.mxu0 0.0
    %555 = vmatpush1.msra.mxu0 0.0
    %556 = vmatprep.subr.mxu0 0.0
    %557 = vmatpush1.msra.mxu0 0.0
    %558 = vmatprep.subr.mxu0 0.0
    %559 = vmatpush1.msra.mxu0 0.0
    %560 = vmatprep.subr.mxu0 0.0
    %561 = vmatpush1.msra.mxu0 0.0
    %562 = vmatprep.subr.mxu0 0.0
    %563 = vmatpush1.msra.mxu0 0.0
    %564 = vmatprep.subr.mxu0 0.0
    %565 = vmatpush1.msra.mxu0 0.0
    %566 = vmatprep.subr.mxu0 0.0
    %567 = vmatpush1.msra.mxu0 0.0
    %568 = vmatprep.subr.mxu0 0.0
    %569 = vmatpush1.msra.mxu0 0.0
    %570 = vmatprep.subr.mxu0 0.0
    %571 = vmatpush1.msra.mxu0 0.0
    %572 = vmatprep.subr.mxu0 0.0
    %573 = vmatpush1.msra.mxu0 0.0
    %574 = vmatprep.subr.mxu0 0.0
    %575 = vmatpush1.msra.mxu0 0.0
    %576 = vmatprep.subr.mxu0 0.0
    %577 = vmatpush1.msra.mxu0 0.0
    %578 = vmatprep.subr.mxu0 0.0
    %579 = vmatpush1.msra.mxu0 0.0
    %580 = vmatprep.subr.mxu0 0.0
    %581 = vmatpush1.msra.mxu0 0.0
    %582 = vmatprep.subr.mxu0 0.0
    %583 = vmatpush1.msra.mxu0 0.0
    %584 = vmatprep.subr.mxu0 0.0
    %585 = vmatpush1.msra.mxu0 0.0
    %586 = vmatprep.subr.mxu0 0.0
    %587 = vmatpush1.msra.mxu0 0.0
    %588 = vmatprep.subr.mxu0 0.0
    %589 = vmatpush1.msra.mxu0 0.0
    %590 = vmatprep.subr.mxu0 0.0
    %591 = vmatpush1.msra.mxu0 0.0
    %592 = vmatprep.subr.mxu0 0.0
    %593 = vmatpush1.msra.mxu0 0.0
    %594 = vmatprep.subr.mxu0 0.0
    %595 = vmatpush1.msra.mxu0 0.0
    %596 = vmatprep.subr.mxu0 0.0
    %597 = vmatpush1.msra.mxu0 0.0
    %598 = vmatprep.subr.mxu0 0.0
    %599 = vmatpush1.msra.mxu0 0.0
    %600 = vmatprep.subr.mxu0 0.0
    %601 = vmatpush1.msra.mxu0 0.0
    %602 = vmatprep.mubr.f32.mxu0 0.0
    %603 = vmatmul.mubr.f32.gmra.mrb[0].mxu0 %v536
    %v604 = vpop.f32.mrb[0].mxu0
    %v605 = vadd.f32 %v42, %v604
    %v606 = vpop.f32.mrb[0].mxu0
    %607 = vdwg.mxu0
    %v608 = vmax.f32 %v605, 0.0
    %v610 = vrot.slane %v527, 4
    %v611 = vsel %vm138, %v610, 0
    %613 = vmatprep.subr.mxu0 0.0
    %614 = vmatpush1.msra.mxu0 %v21
    %615 = vmatprep.subr.mxu0 0.0
    %616 = vmatpush1.msra.mxu0 %v22
    %617 = vmatprep.subr.mxu0 0.0
    %618 = vmatpush1.msra.mxu0 %v23
    %619 = vmatprep.subr.mxu0 0.0
    %620 = vmatpush1.msra.mxu0 %v24
    %621 = vmatprep.subr.mxu0 0.0
    %622 = vmatpush1.msra.mxu0 0.0
    %623 = vmatprep.subr.mxu0 0.0
    %624 = vmatpush1.msra.mxu0 0.0
    %625 = vmatprep.subr.mxu0 0.0
    %626 = vmatpush1.msra.mxu0 0.0
    %627 = vmatprep.subr.mxu0 0.0
    %628 = vmatpush1.msra.mxu0 0.0
    %629 = vmatprep.subr.mxu0 0.0
    %630 = vmatpush1.msra.mxu0 0.0
    %631 = vmatprep.subr.mxu0 0.0
    %632 = vmatpush1.msra.mxu0 0.0
    %633 = vmatprep.subr.mxu0 0.0
    %634 = vmatpush1.msra.mxu0 0.0
    %635 = vmatprep.subr.mxu0 0.0
    %636 = vmatpush1.msra.mxu0 0.0
    %637 = vmatprep.subr.mxu0 0.0
    %638 = vmatpush1.msra.mxu0 0.0
    %639 = vmatprep.subr.mxu0 0.0
    %640 = vmatpush1.msra.mxu0 0.0
    %641 = vmatprep.subr.mxu0 0.0
    %642 = vmatpush1.msra.mxu0 0.0
    %643 = vmatprep.subr.mxu0 0.0
    %644 = vmatpush1.msra.mxu0 0.0
    %645 = vmatprep.subr.mxu0 0.0
    %646 = vmatpush1.msra.mxu0 0.0
    %647 = vmatprep.subr.mxu0 0.0
    %648 = vmatpush1.msra.mxu0 0.0
    %649 = vmatprep.subr.mxu0 0.0
    %650 = vmatpush1.msra.mxu0 0.0
    %651 = vmatprep.subr.mxu0 0.0
    %652 = vmatpush1.msra.mxu0 0.0
    %653 = vmatprep.subr.mxu0 0.0
    %654 = vmatpush1.msra.mxu0 0.0
    %655 = vmatprep.subr.mxu0 0.0
    %656 = vmatpush1.msra.mxu0 0.0
    %657 = vmatprep.subr.mxu0 0.0
    %658 = vmatpush1.msra.mxu0 0.0
    %659 = vmatprep.subr.mxu0 0.0
    %660 = vmatpush1.msra.mxu0 0.0
    %661 = vmatprep.subr.mxu0 0.0
    %662 = vmatpush1.msra.mxu0 0.0
    %663 = vmatprep.subr.mxu0 0.0
    %664 = vmatpush1.msra.mxu0 0.0
    %665 = vmatprep.subr.mxu0 0.0
    %666 = vmatpush1.msra.mxu0 0.0
    %667 = vmatprep.subr.mxu0 0.0
    %668 = vmatpush1.msra.mxu0 0.0
    %669 = vmatprep.subr.mxu0 0.0
    %670 = vmatpush1.msra.mxu0 0.0
    %671 = vmatprep.subr.mxu0 0.0
    %672 = vmatpush1.msra.mxu0 0.0
    %673 = vmatprep.subr.mxu0 0.0
    %674 = vmatpush1.msra.mxu0 0.0
    %675 = vmatprep.subr.mxu0 0.0
    %676 = vmatpush1.msra.mxu0 0.0
    %677 = vmatprep.mubr.f32.mxu0 0.0
    %678 = vmatmul.mubr.f32.gmra.mrb[0].mxu0 %v611
    %v679 = vpop.f32.mrb[0].mxu0
    %v680 = vadd.f32 0.0, %v679
    %v681 = vpop.f32.mrb[0].mxu0
    %682 = vdwg.mxu0
    %v684 = vrot.slane %v680, 2
    %v686 = vadd.f32 %v130, %v684
    %v687 = vmax.f32 %v686, 0.0
    %v689 = vrot.slane %v608, 2
    %690 = vrot.lane.b32.xlu0 %v689, 32
    %v691 = vpop.permute.xlu0 %690
    %v693 = vsel %vm138, %v687, %v691
    %v695 = vrot.slane %v693, 6
    %v696 = vsel %vm215, %v695, 0
    %698 = vmatprep.subr.mxu0 0.0
    %699 = vmatpush1.msra.mxu0 %v30
    %700 = vmatprep.subr.mxu0 0.0
    %701 = vmatpush1.msra.mxu0 %v31
    %702 = vmatprep.subr.mxu0 0.0
    %703 = vmatpush1.msra.mxu0 %v32
    %704 = vmatprep.subr.mxu0 0.0
    %705 = vmatpush1.msra.mxu0 %v33
    %706 = vmatprep.subr.mxu0 0.0
    %707 = vmatpush1.msra.mxu0 %v34
    %708 = vmatprep.subr.mxu0 0.0
    %709 = vmatpush1.msra.mxu0 %v35
    %710 = vmatprep.subr.mxu0 0.0
    %711 = vmatpush1.msra.mxu0 %v36
    %712 = vmatprep.subr.mxu0 0.0
    %713 = vmatpush1.msra.mxu0 %v37
    %714 = vmatprep.subr.mxu0 0.0
    %715 = vmatpush1.msra.mxu0 0.0
    %716 = vmatprep.subr.mxu0 0.0
    %717 = vmatpush1.msra.mxu0 0.0
    %718 = vmatprep.subr.mxu0 0.0
    %719 = vmatpush1.msra.mxu0 0.0
    %720 = vmatprep.subr.mxu0 0.0
    %721 = vmatpush1.msra.mxu0 0.0
    %722 = vmatprep.subr.mxu0 0.0
    %723 = vmatpush1.msra.mxu0 0.0
    %724 = vmatprep.subr.mxu0 0.0
    %725 = vmatpush1.msra.mxu0 0.0
    %726 = vmatprep.subr.mxu0 0.0
    %727 = vmatpush1.msra.mxu0 0.0
    %728 = vmatprep.subr.mxu0 0.0
    %729 = vmatpush1.msra.mxu0 0.0
    %730 = vmatprep.subr.mxu0 0.0
    %731 = vmatpush1.msra.mxu0 0.0
    %732 = vmatprep.subr.mxu0 0.0
    %733 = vmatpush1.msra.mxu0 0.0
    %734 = vmatprep.subr.mxu0 0.0
    %735 = vmatpush1.msra.mxu0 0.0
    %736 = vmatprep.subr.mxu0 0.0
    %737 = vmatpush1.msra.mxu0 0.0
    %738 = vmatprep.subr.mxu0 0.0
    %739 = vmatpush1.msra.mxu0 0.0
    %740 = vmatprep.subr.mxu0 0.0
    %741 = vmatpush1.msra.mxu0 0.0
    %742 = vmatprep.subr.mxu0 0.0
    %743 = vmatpush1.msra.mxu0 0.0
    %744 = vmatprep.subr.mxu0 0.0
    %745 = vmatpush1.msra.mxu0 0.0
    %746 = vmatprep.subr.mxu0 0.0
    %747 = vmatpush1.msra.mxu0 0.0
    %748 = vmatprep.subr.mxu0 0.0
    %749 = vmatpush1.msra.mxu0 0.0
    %750 = vmatprep.subr.mxu0 0.0
    %751 = vmatpush1.msra.mxu0 0.0
    %752 = vmatprep.subr.mxu0 0.0
    %753 = vmatpush1.msra.mxu0 0.0
    %754 = vmatprep.subr.mxu0 0.0
    %755 = vmatpush1.msra.mxu0 0.0
    %756 = vmatprep.subr.mxu0 0.0
    %757 = vmatpush1.msra.mxu0 0.0
    %758 = vmatprep.subr.mxu0 0.0
    %759 = vmatpush1.msra.mxu0 0.0
    %760 = vmatprep.subr.mxu0 0.0
    %761 = vmatpush1.msra.mxu0 0.0
    %762 = vmatprep.mubr.f32.mxu0 0.0
    %763 = vmatmul.mubr.f32.gmra.mrb[0].mxu0 %v696
    %v764 = vpop.f32.mrb[0].mxu0
    %v765 = vadd.f32 %v42, %v764
    %v766 = vpop.f32.mrb[0].mxu0
    %767 = vdwg.mxu0
    %v768 = vmax.f32 %v765, 0.0
    %v770 = vrot.slane %v687, 6
    %v771 = vsel %vm138, %v770, 0
    %773 = vmatprep.subr.mxu0 0.0
    %774 = vmatpush1.msra.mxu0 %v21
    %775 = vmatprep.subr.mxu0 0.0
    %776 = vmatpush1.msra.mxu0 %v22
    %777 = vmatprep.subr.mxu0 0.0
    %778 = vmatpush1.msra.mxu0 %v23
    %779 = vmatprep.subr.mxu0 0.0
    %780 = vmatpush1.msra.mxu0 %v24
    %781 = vmatprep.subr.mxu0 0.0
    %782 = vmatpush1.msra.mxu0 0.0
    %783 = vmatprep.subr.mxu0 0.0
    %784 = vmatpush1.msra.mxu0 0.0
    %785 = vmatprep.subr.mxu0 0.0
    %786 = vmatpush1.msra.mxu0 0.0
    %787 = vmatprep.subr.mxu0 0.0
    %788 = vmatpush1.msra.mxu0 0.0
    %789 = vmatprep.subr.mxu0 0.0
    %790 = vmatpush1.msra.mxu0 0.0
    %791 = vmatprep.subr.mxu0 0.0
    %792 = vmatpush1.msra.mxu0 0.0
    %793 = vmatprep.subr.mxu0 0.0
    %794 = vmatpush1.msra.mxu0 0.0
    %795 = vmatprep.subr.mxu0 0.0
    %796 = vmatpush1.msra.mxu0 0.0
    %797 = vmatprep.subr.mxu0 0.0
    %798 = vmatpush1.msra.mxu0 0.0
    %799 = vmatprep.subr.mxu0 0.0
    %800 = vmatpush1.msra.mxu0 0.0
    %801 = vmatprep.subr.mxu0 0.0
    %802 = vmatpush1.msra.mxu0 0.0
    %803 = vmatprep.subr.mxu0 0.0
    %804 = vmatpush1.msra.mxu0 0.0
    %805 = vmatprep.subr.mxu0 0.0
    %806 = vmatpush1.msra.mxu0 0.0
    %807 = vmatprep.subr.mxu0 0.0
    %808 = vmatpush1.msra.mxu0 0.0
    %809 = vmatprep.subr.mxu0 0.0
    %810 = vmatpush1.msra.mxu0 0.0
    %811 = vmatprep.subr.mxu0 0.0
    %812 = vmatpush1.msra.mxu0 0.0
    %813 = vmatprep.subr.mxu0 0.0
    %814 = vmatpush1.msra.mxu0 0.0
    %815 = vmatprep.subr.mxu0 0.0
    %816 = vmatpush1.msra.mxu0 0.0
    %817 = vmatprep.subr.mxu0 0.0
    %818 = vmatpush1.msra.mxu0 0.0
    %819 = vmatprep.subr.mxu0 0.0
    %820 = vmatpush1.msra.mxu0 0.0
    %821 = vmatprep.subr.mxu0 0.0
    %822 = vmatpush1.msra.mxu0 0.0
    %823 = vmatprep.subr.mxu0 0.0
    %824 = vmatpush1.msra.mxu0 0.0
    %825 = vmatprep.subr.mxu0 0.0
    %826 = vmatpush1.msra.mxu0 0.0
    %827 = vmatprep.subr.mxu0 0.0
    %828 = vmatpush1.msra.mxu0 0.0
    %829 = vmatprep.subr.mxu0 0.0
    %830 = vmatpush1.msra.mxu0 0.0
    %831 = vmatprep.subr.mxu0 0.0
    %832 = vmatpush1.msra.mxu0 0.0
    %833 = vmatprep.subr.mxu0 0.0
    %834 = vmatpush1.msra.mxu0 0.0
    %835 = vmatprep.subr.mxu0 0.0
    %836 = vmatpush1.msra.mxu0 0.0
    %837 = vmatprep.mubr.f32.mxu0 0.0
    %838 = vmatmul.mubr.f32.gmra.mrb[0].mxu0 %v771
    %v839 = vpop.f32.mrb[0].mxu0
    %v840 = vadd.f32 0.0, %v839
    %v841 = vpop.f32.mrb[0].mxu0
    %842 = vdwg.mxu0
    %v843 = vadd.f32 %v135, %v840
    %v844 = vmax.f32 %v843, 0.0
    %846 = vrot.lane.b32.xlu0 %v768, 32
    %v847 = vpop.permute.xlu0 %846
    %v849 = vsel %vm138, %v844, %v847
    %v851 = vsel %vm215, %v849, 0
    %853 = vmatprep.subr.mxu0 0.0
    %854 = vmatpush1.msra.mxu0 %v30
    %855 = vmatprep.subr.mxu0 0.0
    %856 = vmatpush1.msra.mxu0 %v31
    %857 = vmatprep.subr.mxu0 0.0
    %858 = vmatpush1.msra.mxu0 %v32
    %859 = vmatprep.subr.mxu0 0.0
    %860 = vmatpush1.msra.mxu0 %v33
    %861 = vmatprep.subr.mxu0 0.0
    %862 = vmatpush1.msra.mxu0 %v34
    %863 = vmatprep.subr.mxu0 0.0
    %864 = vmatpush1.msra.mxu0 %v35
    %865 = vmatprep.subr.mxu0 0.0
    %866 = vmatpush1.msra.mxu0 %v36
    %867 = vmatprep.subr.mxu0 0.0
    %868 = vmatpush1.msra.mxu0 %v37
    %869 = vmatprep.subr.mxu0 0.0
    %870 = vmatpush1.msra.mxu0 0.0
    %871 = vmatprep.subr.mxu0 0.0
    %872 = vmatpush1.msra.mxu0 0.0
    %873 = vmatprep.subr.mxu0 0.0
    %874 = vmatpush1.msra.mxu0 0.0
    %875 = vmatprep.subr.mxu0 0.0
    %876 = vmatpush1.msra.mxu0 0.0
    %877 = vmatprep.subr.mxu0 0.0
    %878 = vmatpush1.msra.mxu0 0.0
    %879 = vmatprep.subr.mxu0 0.0
    %880 = vmatpush1.msra.mxu0 0.0
    %881 = vmatprep.subr.mxu0 0.0
    %882 = vmatpush1.msra.mxu0 0.0
    %883 = vmatprep.subr.mxu0 0.0
    %884 = vmatpush1.msra.mxu0 0.0
    %885 = vmatprep.subr.mxu0 0.0
    %886 = vmatpush1.msra.mxu0 0.0
    %887 = vmatprep.subr.mxu0 0.0
    %888 = vmatpush1.msra.mxu0 0.0
    %889 = vmatprep.subr.mxu0 0.0
    %890 = vmatpush1.msra.mxu0 0.0
    %891 = vmatprep.subr.mxu0 0.0
    %892 = vmatpush1.msra.mxu0 0.0
    %893 = vmatprep.subr.mxu0 0.0
    %894 = vmatpush1.msra.mxu0 0.0
    %895 = vmatprep.subr.mxu0 0.0
    %896 = vmatpush1.msra.mxu0 0.0
    %897 = vmatprep.subr.mxu0 0.0
    %898 = vmatpush1.msra.mxu0 0.0
    %899 = vmatprep.subr.mxu0 0.0
    %900 = vmatpush1.msra.mxu0 0.0
    %901 = vmatprep.subr.mxu0 0.0
    %902 = vmatpush1.msra.mxu0 0.0
    %903 = vmatprep.subr.mxu0 0.0
    %904 = vmatpush1.msra.mxu0 0.0
    %905 = vmatprep.subr.mxu0 0.0
    %906 = vmatpush1.msra.mxu0 0.0
    %907 = vmatprep.subr.mxu0 0.0
    %908 = vmatpush1.msra.mxu0 0.0
    %909 = vmatprep.subr.mxu0 0.0
    %910 = vmatpush1.msra.mxu0 0.0
    %911 = vmatprep.subr.mxu0 0.0
    %912 = vmatpush1.msra.mxu0 0.0
    %913 = vmatprep.subr.mxu0 0.0
    %914 = vmatpush1.msra.mxu0 0.0
    %915 = vmatprep.subr.mxu0 0.0
    %916 = vmatpush1.msra.mxu0 0.0
    %917 = vmatprep.mubr.f32.mxu0 0.0
    %918 = vmatmul.mubr.f32.gmra.mrb[0].mxu0 %v851
    %v919 = vpop.f32.mrb[0].mxu0
    %v920 = vadd.f32 %v42, %v919
    %v921 = vpop.f32.mrb[0].mxu0
    %922 = vdwg.mxu0
    %v923 = vmax.f32 %v920, 0.0
    %v925 = vsel %vm138, %v844, 0
    %927 = vmatprep.subr.mxu0 0.0
    %928 = vmatpush1.msra.mxu0 %v21
    %929 = vmatprep.subr.mxu0 0.0
    %930 = vmatpush1.msra.mxu0 %v22
    %931 = vmatprep.subr.mxu0 0.0
    %932 = vmatpush1.msra.mxu0 %v23
    %933 = vmatprep.subr.mxu0 0.0
    %934 = vmatpush1.msra.mxu0 %v24
    %935 = vmatprep.subr.mxu0 0.0
    %936 = vmatpush1.msra.mxu0 0.0
    %937 = vmatprep.subr.mxu0 0.0
    %938 = vmatpush1.msra.mxu0 0.0
    %939 = vmatprep.subr.mxu0 0.0
    %940 = vmatpush1.msra.mxu0 0.0
    %941 = vmatprep.subr.mxu0 0.0
    %942 = vmatpush1.msra.mxu0 0.0
    %943 = vmatprep.subr.mxu0 0.0
    %944 = vmatpush1.msra.mxu0 0.0
    %945 = vmatprep.subr.mxu0 0.0
    %946 = vmatpush1.msra.mxu0 0.0
    %947 = vmatprep.subr.mxu0 0.0
    %948 = vmatpush1.msra.mxu0 0.0
    %949 = vmatprep.subr.mxu0 0.0
    %950 = vmatpush1.msra.mxu0 0.0
    %951 = vmatprep.subr.mxu0 0.0
    %952 = vmatpush1.msra.mxu0 0.0
    %953 = vmatprep.subr.mxu0 0.0
    %954 = vmatpush1.msra.mxu0 0.0
    %955 = vmatprep.subr.mxu0 0.0
    %956 = vmatpush1.msra.mxu0 0.0
    %957 = vmatprep.subr.mxu0 0.0
    %958 = vmatpush1.msra.mxu0 0.0
    %959 = vmatprep.subr.mxu0 0.0
    %960 = vmatpush1.msra.mxu0 0.0
    %961 = vmatprep.subr.mxu0 0.0
    %962 = vmatpush1.msra.mxu0 0.0
    %963 = vmatprep.subr.mxu0 0.0
    %964 = vmatpush1.msra.mxu0 0.0
    %965 = vmatprep.subr.mxu0 0.0
    %966 = vmatpush1.msra.mxu0 0.0
    %967 = vmatprep.subr.mxu0 0.0
    %968 = vmatpush1.msra.mxu0 0.0
    %969 = vmatprep.subr.mxu0 0.0
    %970 = vmatpush1.msra.mxu0 0.0
    %971 = vmatprep.subr.mxu0 0.0
    %972 = vmatpush1.msra.mxu0 0.0
    %973 = vmatprep.subr.mxu0 0.0
    %974 = vmatpush1.msra.mxu0 0.0
    %975 = vmatprep.subr.mxu0 0.0
    %976 = vmatpush1.msra.mxu0 0.0
    %977 = vmatprep.subr.mxu0 0.0
    %978 = vmatpush1.msra.mxu0 0.0
    %979 = vmatprep.subr.mxu0 0.0
    %980 = vmatpush1.msra.mxu0 0.0
    %981 = vmatprep.subr.mxu0 0.0
    %982 = vmatpush1.msra.mxu0 0.0
    %983 = vmatprep.subr.mxu0 0.0
    %984 = vmatpush1.msra.mxu0 0.0
    %985 = vmatprep.subr.mxu0 0.0
    %986 = vmatpush1.msra.mxu0 0.0
    %987 = vmatprep.subr.mxu0 0.0
    %988 = vmatpush1.msra.mxu0 0.0
    %989 = vmatprep.subr.mxu0 0.0
    %990 = vmatpush1.msra.mxu0 0.0
    %991 = vmatprep.mubr.f32.mxu0 0.0
    %992 = vmatmul.mubr.f32.gmra.mrb[0].mxu0 %v925
    %v993 = vpop.f32.mrb[0].mxu0
    %v994 = vadd.f32 0.0, %v993
    %v995 = vpop.f32.mrb[0].mxu0
    %996 = vdwg.mxu0
    %v998 = vrot.slane %v994, 6
    %v1000 = vadd.f32 %v135, %v998
    %v1001 = vmax.f32 %v1000, 0.0
    %v1003 = vrot.slane %v923, 6
    %1004 = vrot.lane.b32.xlu0 %v1003, 32
    %v1005 = vpop.permute.xlu0 %1004
    %v1007 = vsel %vm138, %v1001, %v1005
    %v1009 = vrot.slane %v1007, 2
    %v1010 = vsel %vm215, %v1009, 0
    %1012 = vmatprep.subr.mxu0 0.0
    %1013 = vmatpush1.msra.mxu0 %v30
    %1014 = vmatprep.subr.mxu0 0.0
    %1015 = vmatpush1.msra.mxu0 %v31
    %1016 = vmatprep.subr.mxu0 0.0
    %1017 = vmatpush1.msra.mxu0 %v32
    %1018 = vmatprep.subr.mxu0 0.0
    %1019 = vmatpush1.msra.mxu0 %v33
    %1020 = vmatprep.subr.mxu0 0.0
    %1021 = vmatpush1.msra.mxu0 %v34
    %1022 = vmatprep.subr.mxu0 0.0
    %1023 = vmatpush1.msra.mxu0 %v35
    %1024 = vmatprep.subr.mxu0 0.0
    %1025 = vmatpush1.msra.mxu0 %v36
    %1026 = vmatprep.subr.mxu0 0.0
    %1027 = vmatpush1.msra.mxu0 %v37
    %1028 = vmatprep.subr.mxu0 0.0
    %1029 = vmatpush1.msra.mxu0 0.0
    %1030 = vmatprep.subr.mxu0 0.0
    %1031 = vmatpush1.msra.mxu0 0.0
    %1032 = vmatprep.subr.mxu0 0.0
    %1033 = vmatpush1.msra.mxu0 0.0
    %1034 = vmatprep.subr.mxu0 0.0
    %1035 = vmatpush1.msra.mxu0 0.0
    %1036 = vmatprep.subr.mxu0 0.0
    %1037 = vmatpush1.msra.mxu0 0.0
    %1038 = vmatprep.subr.mxu0 0.0
    %1039 = vmatpush1.msra.mxu0 0.0
    %1040 = vmatprep.subr.mxu0 0.0
    %1041 = vmatpush1.msra.mxu0 0.0
    %1042 = vmatprep.subr.mxu0 0.0
    %1043 = vmatpush1.msra.mxu0 0.0
    %1044 = vmatprep.subr.mxu0 0.0
    %1045 = vmatpush1.msra.mxu0 0.0
    %1046 = vmatprep.subr.mxu0 0.0
    %1047 = vmatpush1.msra.mxu0 0.0
    %1048 = vmatprep.subr.mxu0 0.0
    %1049 = vmatpush1.msra.mxu0 0.0
    %1050 = vmatprep.subr.mxu0 0.0
    %1051 = vmatpush1.msra.mxu0 0.0
    %1052 = vmatprep.subr.mxu0 0.0
    %1053 = vmatpush1.msra.mxu0 0.0
    %1054 = vmatprep.subr.mxu0 0.0
    %1055 = vmatpush1.msra.mxu0 0.0
    %1056 = vmatprep.subr.mxu0 0.0
    %1057 = vmatpush1.msra.mxu0 0.0
    %1058 = vmatprep.subr.mxu0 0.0
    %1059 = vmatpush1.msra.mxu0 0.0
    %1060 = vmatprep.subr.mxu0 0.0
    %1061 = vmatpush1.msra.mxu0 0.0
    %1062 = vmatprep.subr.mxu0 0.0
    %1063 = vmatpush1.msra.mxu0 0.0
    %1064 = vmatprep.subr.mxu0 0.0
    %1065 = vmatpush1.msra.mxu0 0.0
    %1066 = vmatprep.subr.mxu0 0.0
    %1067 = vmatpush1.msra.mxu0 0.0
    %1068 = vmatprep.subr.mxu0 0.0
    %1069 = vmatpush1.msra.mxu0 0.0
    %1070 = vmatprep.subr.mxu0 0.0
    %1071 = vmatpush1.msra.mxu0 0.0
    %1072 = vmatprep.subr.mxu0 0.0
    %1073 = vmatpush1.msra.mxu0 0.0
    %1074 = vmatprep.subr.mxu0 0.0
    %1075 = vmatpush1.msra.mxu0 0.0
    %1076 = vmatprep.mubr.f32.mxu0 0.0
    %1077 = vmatmul.mubr.f32.gmra.mrb[0].mxu0 %v1010
    %v1078 = vpop.f32.mrb[0].mxu0
    %v1079 = vadd.f32 %v42, %v1078
    %v1080 = vpop.f32.mrb[0].mxu0
    %1081 = vdwg.mxu0
    %v1082 = vmax.f32 %v1079, 0.0
    %v1084 = vrot.slane %v1001, 2
    %v1085 = vsel %vm138, %v1084, 0
    %1087 = vmatprep.subr.mxu0 0.0
    %1088 = vmatpush1.msra.mxu0 %v21
    %1089 = vmatprep.subr.mxu0 0.0
    %1090 = vmatpush1.msra.mxu0 %v22
    %1091 = vmatprep.subr.mxu0 0.0
    %1092 = vmatpush1.msra.mxu0 %v23
    %1093 = vmatprep.subr.mxu0 0.0
    %1094 = vmatpush1.msra.mxu0 %v24
    %1095 = vmatprep.subr.mxu0 0.0
    %1096 = vmatpush1.msra.mxu0 0.0
    %1097 = vmatprep.subr.mxu0 0.0
    %1098 = vmatpush1.msra.mxu0 0.0
    %1099 = vmatprep.subr.mxu0 0.0
    %1100 = vmatpush1.msra.mxu0 0.0
    %1101 = vmatprep.subr.mxu0 0.0
    %1102 = vmatpush1.msra.mxu0 0.0
    %1103 = vmatprep.subr.mxu0 0.0
    %1104 = vmatpush1.msra.mxu0 0.0
    %1105 = vmatprep.subr.mxu0 0.0
    %1106 = vmatpush1.msra.mxu0 0.0
    %1107 = vmatprep.subr.mxu0 0.0
    %1108 = vmatpush1.msra.mxu0 0.0
    %1109 = vmatprep.subr.mxu0 0.0
    %1110 = vmatpush1.msra.mxu0 0.0
    %1111 = vmatprep.subr.mxu0 0.0
    %1112 = vmatpush1.msra.mxu0 0.0
    %1113 = vmatprep.subr.mxu0 0.0
    %1114 = vmatpush1.msra.mxu0 0.0
    %1115 = vmatprep.subr.mxu0 0.0
    %1116 = vmatpush1.msra.mxu0 0.0
    %1117 = vmatprep.subr.mxu0 0.0
    %1118 = vmatpush1.msra.mxu0 0.0
    %1119 = vmatprep.subr.mxu0 0.0
    %1120 = vmatpush1.msra.mxu0 0.0
    %1121 = vmatprep.subr.mxu0 0.0
    %1122 = vmatpush1.msra.mxu0 0.0
    %1123 = vmatprep.subr.mxu0 0.0
    %1124 = vmatpush1.msra.mxu0 0.0
    %1125 = vmatprep.subr.mxu0 0.0
    %1126 = vmatpush1.msra.mxu0 0.0
    %1127 = vmatprep.subr.mxu0 0.0
    %1128 = vmatpush1.msra.mxu0 0.0
    %1129 = vmatprep.subr.mxu0 0.0
    %1130 = vmatpush1.msra.mxu0 0.0
    %1131 = vmatprep.subr.mxu0 0.0
    %1132 = vmatpush1.msra.mxu0 0.0
    %1133 = vmatprep.subr.mxu0 0.0
    %1134 = vmatpush1.msra.mxu0 0.0
    %1135 = vmatprep.subr.mxu0 0.0
    %1136 = vmatpush1.msra.mxu0 0.0
    %1137 = vmatprep.subr.mxu0 0.0
    %1138 = vmatpush1.msra.mxu0 0.0
    %1139 = vmatprep.subr.mxu0 0.0
    %1140 = vmatpush1.msra.mxu0 0.0
    %1141 = vmatprep.subr.mxu0 0.0
    %1142 = vmatpush1.msra.mxu0 0.0
    %1143 = vmatprep.subr.mxu0 0.0
    %1144 = vmatpush1.msra.mxu0 0.0
    %1145 = vmatprep.subr.mxu0 0.0
    %1146 = vmatpush1.msra.mxu0 0.0
    %1147 = vmatprep.subr.mxu0 0.0
    %1148 = vmatpush1.msra.mxu0 0.0
    %1149 = vmatprep.subr.mxu0 0.0
    %1150 = vmatpush1.msra.mxu0 0.0
    %1151 = vmatprep.mubr.f32.mxu0 0.0
    %1152 = vmatmul.mubr.f32.gmra.mrb[0].mxu0 %v1085
    %v1153 = vpop.f32.mrb[0].mxu0
    %v1154 = vadd.f32 0.0, %v1153
    %v1155 = vpop.f32.mrb[0].mxu0
    %1156 = vdwg.mxu0
    %v1158 = vrot.slane %v1154, 4
    %v1160 = vadd.f32 %v135, %v1158
    %v1161 = vmax.f32 %v1160, 0.0
    %v1163 = vrot.slane %v1082, 4
    %1164 = vrot.lane.b32.xlu0 %v1163, 32
    %v1165 = vpop.permute.xlu0 %1164
    %v1167 = vsel %vm138, %v1161, %v1165
    %v1169 = vrot.slane %v1167, 4
    %v1170 = vsel %vm215, %v1169, 0
    %1172 = vmatprep.subr.mxu0 0.0
    %1173 = vmatpush1.msra.mxu0 %v30
    %1174 = vmatprep.subr.mxu0 0.0
    %1175 = vmatpush1.msra.mxu0 %v31
    %1176 = vmatprep.subr.mxu0 0.0
    %1177 = vmatpush1.msra.mxu0 %v32
    %1178 = vmatprep.subr.mxu0 0.0
    %1179 = vmatpush1.msra.mxu0 %v33
    %1180 = vmatprep.subr.mxu0 0.0
    %1181 = vmatpush1.msra.mxu0 %v34
    %1182 = vmatprep.subr.mxu0 0.0
    %1183 = vmatpush1.msra.mxu0 %v35
    %1184 = vmatprep.subr.mxu0 0.0
    %1185 = vmatpush1.msra.mxu0 %v36
    %1186 = vmatprep.subr.mxu0 0.0
    %1187 = vmatpush1.msra.mxu0 %v37
    %1188 = vmatprep.subr.mxu0 0.0
    %1189 = vmatpush1.msra.mxu0 0.0
    %1190 = vmatprep.subr.mxu0 0.0
    %1191 = vmatpush1.msra.mxu0 0.0
    %1192 = vmatprep.subr.mxu0 0.0
    %1193 = vmatpush1.msra.mxu0 0.0
    %1194 = vmatprep.subr.mxu0 0.0
    %1195 = vmatpush1.msra.mxu0 0.0
    %1196 = vmatprep.subr.mxu0 0.0
    %1197 = vmatpush1.msra.mxu0 0.0
    %1198 = vmatprep.subr.mxu0 0.0
    %1199 = vmatpush1.msra.mxu0 0.0
    %1200 = vmatprep.subr.mxu0 0.0
    %1201 = vmatpush1.msra.mxu0 0.0
    %1202 = vmatprep.subr.mxu0 0.0
    %1203 = vmatpush1.msra.mxu0 0.0
    %1204 = vmatprep.subr.mxu0 0.0
    %1205 = vmatpush1.msra.mxu0 0.0
    %1206 = vmatprep.subr.mxu0 0.0
    %1207 = vmatpush1.msra.mxu0 0.0
    %1208 = vmatprep.subr.mxu0 0.0
    %1209 = vmatpush1.msra.mxu0 0.0
    %1210 = vmatprep.subr.mxu0 0.0
    %1211 = vmatpush1.msra.mxu0 0.0
    %1212 = vmatprep.subr.mxu0 0.0
    %1213 = vmatpush1.msra.mxu0 0.0
    %1214 = vmatprep.subr.mxu0 0.0
    %1215 = vmatpush1.msra.mxu0 0.0
    %1216 = vmatprep.subr.mxu0 0.0
    %1217 = vmatpush1.msra.mxu0 0.0
    %1218 = vmatprep.subr.mxu0 0.0
    %1219 = vmatpush1.msra.mxu0 0.0
    %1220 = vmatprep.subr.mxu0 0.0
    %1221 = vmatpush1.msra.mxu0 0.0
    %1222 = vmatprep.subr.mxu0 0.0
    %1223 = vmatpush1.msra.mxu0 0.0
    %1224 = vmatprep.subr.mxu0 0.0
    %1225 = vmatpush1.msra.mxu0 0.0
    %1226 = vmatprep.subr.mxu0 0.0
    %1227 = vmatpush1.msra.mxu0 0.0
    %1228 = vmatprep.subr.mxu0 0.0
    %1229 = vmatpush1.msra.mxu0 0.0
    %1230 = vmatprep.subr.mxu0 0.0
    %1231 = vmatpush1.msra.mxu0 0.0
    %1232 = vmatprep.subr.mxu0 0.0
    %1233 = vmatpush1.msra.mxu0 0.0
    %1234 = vmatprep.subr.mxu0 0.0
    %1235 = vmatpush1.msra.mxu0 0.0
    %1236 = vmatprep.mubr.f32.mxu0 0.0
    %1237 = vmatmul.mubr.f32.gmra.mrb[0].mxu0 %v1170
    %v1238 = vpop.f32.mrb[0].mxu0
    %v1239 = vadd.f32 %v42, %v1238
    %v1240 = vpop.f32.mrb[0].mxu0
    %1241 = vdwg.mxu0
    %v1242 = vmax.f32 %v1239, 0.0
    %v1244 = vrot.slane %v1161, 4
    %v1245 = vsel %vm138, %v1244, 0
    %1247 = vmatprep.subr.mxu0 0.0
    %1248 = vmatpush1.msra.mxu0 %v21
    %1249 = vmatprep.subr.mxu0 0.0
    %1250 = vmatpush1.msra.mxu0 %v22
    %1251 = vmatprep.subr.mxu0 0.0
    %1252 = vmatpush1.msra.mxu0 %v23
    %1253 = vmatprep.subr.mxu0 0.0
    %1254 = vmatpush1.msra.mxu0 %v24
    %1255 = vmatprep.subr.mxu0 0.0
    %1256 = vmatpush1.msra.mxu0 0.0
    %1257 = vmatprep.subr.mxu0 0.0
    %1258 = vmatpush1.msra.mxu0 0.0
    %1259 = vmatprep.subr.mxu0 0.0
    %1260 = vmatpush1.msra.mxu0 0.0
    %1261 = vmatprep.subr.mxu0 0.0
    %1262 = vmatpush1.msra.mxu0 0.0
    %1263 = vmatprep.subr.mxu0 0.0
    %1264 = vmatpush1.msra.mxu0 0.0
    %1265 = vmatprep.subr.mxu0 0.0
    %1266 = vmatpush1.msra.mxu0 0.0
    %1267 = vmatprep.subr.mxu0 0.0
    %1268 = vmatpush1.msra.mxu0 0.0
    %1269 = vmatprep.subr.mxu0 0.0
    %1270 = vmatpush1.msra.mxu0 0.0
    %1271 = vmatprep.subr.mxu0 0.0
    %1272 = vmatpush1.msra.mxu0 0.0
    %1273 = vmatprep.subr.mxu0 0.0
    %1274 = vmatpush1.msra.mxu0 0.0
    %1275 = vmatprep.subr.mxu0 0.0
    %1276 = vmatpush1.msra.mxu0 0.0
    %1277 = vmatprep.subr.mxu0 0.0
    %1278 = vmatpush1.msra.mxu0 0.0
    %1279 = vmatprep.subr.mxu0 0.0
    %1280 = vmatpush1.msra.mxu0 0.0
    %1281 = vmatprep.subr.mxu0 0.0
    %1282 = vmatpush1.msra.mxu0 0.0
    %1283 = vmatprep.subr.mxu0 0.0
    %1284 = vmatpush1.msra.mxu0 0.0
    %1285 = vmatprep.subr.mxu0 0.0
    %1286 = vmatpush1.msra.mxu0 0.0
    %1287 = vmatprep.subr.mxu0 0.0
    %1288 = vmatpush1.msra.mxu0 0.0
    %1289 = vmatprep.subr.mxu0 0.0
    %1290 = vmatpush1.msra.mxu0 0.0
    %1291 = vmatprep.subr.mxu0 0.0
    %1292 = vmatpush1.msra.mxu0 0.0
    %1293 = vmatprep.subr.mxu0 0.0
    %1294 = vmatpush1.msra.mxu0 0.0
    %1295 = vmatprep.subr.mxu0 0.0
    %1296 = vmatpush1.msra.mxu0 0.0
    %1297 = vmatprep.subr.mxu0 0.0
    %1298 = vmatpush1.msra.mxu0 0.0
    %1299 = vmatprep.subr.mxu0 0.0
    %1300 = vmatpush1.msra.mxu0 0.0
    %1301 = vmatprep.subr.mxu0 0.0
    %1302 = vmatpush1.msra.mxu0 0.0
    %1303 = vmatprep.subr.mxu0 0.0
    %1304 = vmatpush1.msra.mxu0 0.0
    %1305 = vmatprep.subr.mxu0 0.0
    %1306 = vmatpush1.msra.mxu0 0.0
    %1307 = vmatprep.subr.mxu0 0.0
    %1308 = vmatpush1.msra.mxu0 0.0
    %1309 = vmatprep.subr.mxu0 0.0
    %1310 = vmatpush1.msra.mxu0 0.0
    %1311 = vmatprep.mubr.f32.mxu0 0.0
    %1312 = vmatmul.mubr.f32.gmra.mrb[0].mxu0 %v1245
    %v1313 = vpop.f32.mrb[0].mxu0
    %v1314 = vadd.f32 0.0, %v1313
    %v1315 = vpop.f32.mrb[0].mxu0
    %1316 = vdwg.mxu0
    %v1318 = vrot.slane %v1314, 2
    %v1320 = vadd.f32 %v135, %v1318
    %v1321 = vmax.f32 %v1320, 0.0
    %v1323 = vrot.slane %v1242, 2
    %1324 = vrot.lane.b32.xlu0 %v1323, 32
    %v1325 = vpop.permute.xlu0 %1324
    %v1327 = vsel %vm138, %v1321, %v1325
    %v1329 = vrot.slane %v1327, 6
    %v1330 = vsel %vm215, %v1329, 0
    %1332 = vmatprep.subr.mxu0 0.0
    %1333 = vmatpush1.msra.mxu0 %v30
    %1334 = vmatprep.subr.mxu0 0.0
    %1335 = vmatpush1.msra.mxu0 %v31
    %1336 = vmatprep.subr.mxu0 0.0
    %1337 = vmatpush1.msra.mxu0 %v32
    %1338 = vmatprep.subr.mxu0 0.0
    %1339 = vmatpush1.msra.mxu0 %v33
    %1340 = vmatprep.subr.mxu0 0.0
    %1341 = vmatpush1.msra.mxu0 %v34
    %1342 = vmatprep.subr.mxu0 0.0
    %1343 = vmatpush1.msra.mxu0 %v35
    %1344 = vmatprep.subr.mxu0 0.0
    %1345 = vmatpush1.msra.mxu0 %v36
    %1346 = vmatprep.subr.mxu0 0.0
    %1347 = vmatpush1.msra.mxu0 %v37
    %1348 = vmatprep.subr.mxu0 0.0
    %1349 = vmatpush1.msra.mxu0 0.0
    %1350 = vmatprep.subr.mxu0 0.0
    %1351 = vmatpush1.msra.mxu0 0.0
    %1352 = vmatprep.subr.mxu0 0.0
    %1353 = vmatpush1.msra.mxu0 0.0
    %1354 = vmatprep.subr.mxu0 0.0
    %1355 = vmatpush1.msra.mxu0 0.0
    %1356 = vmatprep.subr.mxu0 0.0
    %1357 = vmatpush1.msra.mxu0 0.0
    %1358 = vmatprep.subr.mxu0 0.0
    %1359 = vmatpush1.msra.mxu0 0.0
    %1360 = vmatprep.subr.mxu0 0.0
    %1361 = vmatpush1.msra.mxu0 0.0
    %1362 = vmatprep.subr.mxu0 0.0
    %1363 = vmatpush1.msra.mxu0 0.0
    %1364 = vmatprep.subr.mxu0 0.0
    %1365 = vmatpush1.msra.mxu0 0.0
    %1366 = vmatprep.subr.mxu0 0.0
    %1367 = vmatpush1.msra.mxu0 0.0
    %1368 = vmatprep.subr.mxu0 0.0
    %1369 = vmatpush1.msra.mxu0 0.0
    %1370 = vmatprep.subr.mxu0 0.0
    %1371 = vmatpush1.msra.mxu0 0.0
    %1372 = vmatprep.subr.mxu0 0.0
    %1373 = vmatpush1.msra.mxu0 0.0
    %1374 = vmatprep.subr.mxu0 0.0
    %1375 = vmatpush1.msra.mxu0 0.0
    %1376 = vmatprep.subr.mxu0 0.0
    %1377 = vmatpush1.msra.mxu0 0.0
    %1378 = vmatprep.subr.mxu0 0.0
    %1379 = vmatpush1.msra.mxu0 0.0
    %1380 = vmatprep.subr.mxu0 0.0
    %1381 = vmatpush1.msra.mxu0 0.0
    %1382 = vmatprep.subr.mxu0 0.0
    %1383 = vmatpush1.msra.mxu0 0.0
    %1384 = vmatprep.subr.mxu0 0.0
    %1385 = vmatpush1.msra.mxu0 0.0
    %1386 = vmatprep.subr.mxu0 0.0
    %1387 = vmatpush1.msra.mxu0 0.0
    %1388 = vmatprep.subr.mxu0 0.0
    %1389 = vmatpush1.msra.mxu0 0.0
    %1390 = vmatprep.subr.mxu0 0.0
    %1391 = vmatpush1.msra.mxu0 0.0
    %1392 = vmatprep.subr.mxu0 0.0
    %1393 = vmatpush1.msra.mxu0 0.0
    %1394 = vmatprep.subr.mxu0 0.0
    %1395 = vmatpush1.msra.mxu0 0.0
    %1396 = vmatprep.mubr.f32.mxu0 0.0
    %1397 = vmatmul.mubr.f32.gmra.mrb[0].mxu0 %v1330
    %v1398 = vpop.f32.mrb[0].mxu0
    %v1399 = vadd.f32 %v42, %v1398
    %v1400 = vpop.f32.mrb[0].mxu0
    %1401 = vdwg.mxu0
    %v1402 = vmax.f32 %v1399, 0.0
    %v1403 = vlaneseq
    %v1404 = vshrl.u32 %v1403, 7
    %v1405 = vsub.s32 0, %v1404
    %v1406 = vrot.slane %v43, %v1405
    %v1408 = vsel %vm138, %v1402, 0
    %1410 = vmatprep.subr.mxu0 0.0
    %1411 = vmatpush1.msra.mxu0 %v26
    %1412 = vmatprep.subr.mxu0 0.0
    %1413 = vmatpush1.msra.mxu0 %v27
    %1414 = vmatprep.subr.mxu0 0.0
    %1415 = vmatpush1.msra.mxu0 %v28
    %1416 = vmatprep.subr.mxu0 0.0
    %1417 = vmatpush1.msra.mxu0 %v29
    %1418 = vmatprep.subr.mxu0 0.0
    %1419 = vmatpush1.msra.mxu0 0.0
    %1420 = vmatprep.subr.mxu0 0.0
    %1421 = vmatpush1.msra.mxu0 0.0
    %1422 = vmatprep.subr.mxu0 0.0
    %1423 = vmatpush1.msra.mxu0 0.0
    %1424 = vmatprep.subr.mxu0 0.0
    %1425 = vmatpush1.msra.mxu0 0.0
    %1426 = vmatprep.subr.mxu0 0.0
    %1427 = vmatpush1.msra.mxu0 0.0
    %1428 = vmatprep.subr.mxu0 0.0
    %1429 = vmatpush1.msra.mxu0 0.0
    %1430 = vmatprep.subr.mxu0 0.0
    %1431 = vmatpush1.msra.mxu0 0.0
    %1432 = vmatprep.subr.mxu0 0.0
    %1433 = vmatpush1.msra.mxu0 0.0
    %1434 = vmatprep.subr.mxu0 0.0
    %1435 = vmatpush1.msra.mxu0 0.0
    %1436 = vmatprep.subr.mxu0 0.0
    %1437 = vmatpush1.msra.mxu0 0.0
    %1438 = vmatprep.subr.mxu0 0.0
    %1439 = vmatpush1.msra.mxu0 0.0
    %1440 = vmatprep.subr.mxu0 0.0
    %1441 = vmatpush1.msra.mxu0 0.0
    %1442 = vmatprep.subr.mxu0 0.0
    %1443 = vmatpush1.msra.mxu0 0.0
    %1444 = vmatprep.subr.mxu0 0.0
    %1445 = vmatpush1.msra.mxu0 0.0
    %1446 = vmatprep.subr.mxu0 0.0
    %1447 = vmatpush1.msra.mxu0 0.0
    %1448 = vmatprep.subr.mxu0 0.0
    %1449 = vmatpush1.msra.mxu0 0.0
    %1450 = vmatprep.subr.mxu0 0.0
    %1451 = vmatpush1.msra.mxu0 0.0
    %1452 = vmatprep.subr.mxu0 0.0
    %1453 = vmatpush1.msra.mxu0 0.0
    %1454 = vmatprep.subr.mxu0 0.0
    %1455 = vmatpush1.msra.mxu0 0.0
    %1456 = vmatprep.subr.mxu0 0.0
    %1457 = vmatpush1.msra.mxu0 0.0
    %1458 = vmatprep.subr.mxu0 0.0
    %1459 = vmatpush1.msra.mxu0 0.0
    %1460 = vmatprep.subr.mxu0 0.0
    %1461 = vmatpush1.msra.mxu0 0.0
    %1462 = vmatprep.subr.mxu0 0.0
    %1463 = vmatpush1.msra.mxu0 0.0
    %1464 = vmatprep.subr.mxu0 0.0
    %1465 = vmatpush1.msra.mxu0 0.0
    %1466 = vmatprep.subr.mxu0 0.0
    %1467 = vmatpush1.msra.mxu0 0.0
    %1468 = vmatprep.subr.mxu0 0.0
    %1469 = vmatpush1.msra.mxu0 0.0
    %1470 = vmatprep.subr.mxu0 0.0
    %1471 = vmatpush1.msra.mxu0 0.0
    %1472 = vmatprep.subr.mxu0 0.0
    %1473 = vmatpush1.msra.mxu0 0.0
    %1474 = vmatprep.mubr.f32.mxu0 0.0
    %1475 = vmatmul.mubr.f32.gmra.mrb[0].mxu0 %v1408
    %v1476 = vpop.f32.mrb[0].mxu0
    %v1477 = vadd.f32 %v1406, %v1476
    %v1478 = vpop.f32.mrb[0].mxu0
    %1479 = vdwg.mxu0
    %vm1480 = vcmask 9216
    %1481 = vst.msk [vmem:[#allocation2] sm:$0x3] %vm1480, %v1477
    // Predicated region
    $region22: #{tpu_custom_call.1} parent=1 // pred_check
      _
    $region23: #{tpu_custom_call.1} parent=1 // pred_check_branch
      %1483 = sbr.rel (0) target = $region25
    $region24: #{tpu_custom_call.1} parent=1 // pred_region
      %s1485 = ssub.s32 32, 32
      %1486 = vsyncadd [#allocation3], %s1485
      %s1488 = sshll.u32 [#allocation2], 4
      %s1489 = int_to_ptr.vmem [resolvable:$true] %s1488
      %1491 = dma.vmem_to_hbm [thread:$0]  %s1489, 32, %s5, [#allocation3]
    $region25: #{tpu_custom_call.1} parent=1 // pred_fallthru
      _
    // Predicated region
    $region26: #{tpu_custom_call.1} parent=1 // pred_check
      _
    $region27: #{tpu_custom_call.1} parent=1 // pred_check_branch
      %1493 = sbr.rel (0) target = $region29
    $region28: #{tpu_custom_call.1} parent=1 // pred_region
      %1494 = dma.done [#allocation3], 32
    $region29: #{tpu_custom_call.1} parent=1 // pred_fallthru
      _
    %1495 = vsyncpa [#allocation3], 1

</llo_original>
